<compile_context>
chip_gen: v5e
topology: v5e:2x2
jax: 0.10.0
libtpu: 0.0.40
codegen_flags: <defaults>
</compile_context>

<pallas_src>
import math
import functools

import numpy as np
import jax
import jax.numpy as jnp
from jax.experimental import pallas as pl
from jax.experimental.pallas import tpu as pltpu


def _torch_same_pad(k, d=1):
    """PyTorch Conv1d(padding='same') asymmetric pad: (left, right)."""
    total = d * (k - 1)
    left = total // 2
    return left, total - left


# ------------------------------------------------------------------------------
# Fused kernel: per grid step b
#   encoder : x_enc = b_eff + sum_tau xp[tau:tau+L] @ W_eff[tau]      (L, C)
#   VarUnit : mean/var (softplus) + reparameterised sample qz          (L, Z)
#   RecUnit : rec = qz @ W_rec + b_rec                                 (L, C)
#   pred    : p1 = W_p1 @ qz + b_p1 ; pred = p1 @ W_p2 + b_p2          (P, O)
# Outputs: pred (P, O) and a lane-dense slab [rec | qz | mean | var] (L, C+3Z).
# ------------------------------------------------------------------------------
def _tnet_kernel(xp_ref, eps_ref, weff_ref, beff_ref,
                 wloc_ref, bloc_ref, wvar_ref, bvar_ref,
                 wrec_ref, brec_ref, wp1_ref, bp1_ref, wp2_ref, bp2_ref,
                 pred_ref, slab_ref, *, L, K_max):
    C = brec_ref.shape[-1]

    # ---- folded multi-scale encoder: K_max shifted (L,C)@(C,C) matmuls ----
    x_enc = jnp.broadcast_to(beff_ref[...], (L, C)).astype(jnp.float32)
    for tau in range(K_max):                              # static unroll, real taps only
        x_enc = x_enc + jnp.dot(xp_ref[0, pl.ds(tau, L), :], weff_ref[tau],
                                preferred_element_type=jnp.float32)

    # ---- VarUnit (loc / var Linear + Softplus + rsample) ----
    mean = jnp.dot(x_enc, wloc_ref[...], preferred_element_type=jnp.float32) + bloc_ref[...]
    pre = jnp.dot(x_enc, wvar_ref[...], preferred_element_type=jnp.float32) + bvar_ref[...]
    var = jnp.maximum(pre, 0.0) + jnp.log1p(jnp.exp(-jnp.abs(pre)))   # stable softplus
    # torch.distributions.Normal(loc=mean, scale=var).rsample()
    qz = mean + var * eps_ref[0]                          # (L, Z)

    # ---- RecUnit ----
    rec = jnp.dot(qz, wrec_ref[...], preferred_element_type=jnp.float32) + brec_ref[...]

    # ---- predictor: Linear over time axis, then over feature axis ----
    p1 = jnp.dot(wp1_ref[...], qz, preferred_element_type=jnp.float32) + bp1_ref[...]   # (P, Z)
    pred = jnp.dot(p1, wp2_ref[...], preferred_element_type=jnp.float32) + bp2_ref[...] # (P, O)

    pred_ref[0] = pred.astype(pred_ref.dtype)
    slab_ref[0] = jnp.concatenate([rec, qz, mean, var], axis=-1).astype(slab_ref.dtype)


class TNetPallas:
    def __init__(self, in_dim, out_dim, seq_len, pred_len, inner_t, key):
        self.in_dim, self.out_dim = in_dim, out_dim
        self.seq_len, self.pred_len, self.inner_t = seq_len, pred_len, inner_t
        self.kernel_max = int(math.floor(math.log(seq_len / 2, 2))) + 1
        self.K_max = 2 ** (self.kernel_max - 1)             # largest conv kernel size
        self.P_left = (self.K_max - 1) // 2
        self.P_right = (self.K_max - 1) - self.P_left

        # ---- deterministic parameter init (PyTorch layouts) ----
        ks = iter(jax.random.split(key, 4 * self.kernel_max + 16))

        def nrm(shape, scale=0.05):
            return scale * jax.random.normal(next(ks), shape, dtype=jnp.float32)

        p = {}
        p['w_ms'] = [nrm((in_dim, in_dim, 2 ** i)) for i in range(self.kernel_max)]   # (Cout,Cin,k)
        p['b_ms'] = [nrm((in_dim,)) for _ in range(self.kernel_max)]
        p['w_redu'] = nrm((in_dim, self.kernel_max * in_dim, 1))
        p['b_redu'] = nrm((in_dim,))
        p['w_loc'] = nrm((inner_t, in_dim)); p['b_loc'] = nrm((inner_t,))
        p['w_var'] = nrm((inner_t, in_dim)); p['b_var'] = nrm((inner_t,))
        p['w_rec'] = nrm((in_dim, inner_t)); p['b_rec'] = nrm((in_dim,))
        p['w_p1'] = nrm((pred_len, seq_len)); p['b_p1'] = nrm((pred_len,))
        p['w_p2'] = nrm((out_dim, inner_t)); p['b_p2'] = nrm((out_dim,))
        self.p = p

        # ---- fold the 1x1 reduce conv into the tap weights (exact rewrite) ----
        #   x_enc = b_redu + sum_i b_i @ Wr_i + sum_tau x_shift[tau] @ (sum_i W_tap[i,tau] @ Wr_i)
        C, Kmax = in_dim, self.K_max
        w_redu_np = np.asarray(p['w_redu'])
        weff = np.zeros((Kmax, C, C), np.float32)
        beff = np.asarray(p['b_redu'], np.float32).copy()   # (C,)
        for i in range(self.kernel_max):
            k = 2 ** i
            lp, _ = _torch_same_pad(k)
            off = self.P_left - lp                           # align scale i into the K_max tap bank
            w = np.asarray(p['w_ms'][i])                     # (Cout, Cin, k)
            wr = w_redu_np[:, i * C:(i + 1) * C, 0].T        # (C, C): conv_i out -> fused out
            for tau in range(k):                             # only the real (nonzero) taps
                weff[off + tau] += w[:, :, tau].T @ wr
            beff += np.asarray(p['b_ms'][i]) @ wr
        self.weff = jnp.asarray(weff)                        # (K_max, C, C)
        self.beff = jnp.asarray(beff).reshape(1, C)

        self.w_loc_t = p['w_loc'].T; self.b_loc2 = p['b_loc'].reshape(1, inner_t)
        self.w_var_t = p['w_var'].T; self.b_var2 = p['b_var'].reshape(1, inner_t)
        self.w_rec_t = p['w_rec'].T; self.b_rec2 = p['b_rec'].reshape(1, in_dim)
        self.w_p1 = p['w_p1'];       self.b_p1_col = p['b_p1'].reshape(pred_len, 1)
        self.w_p2_t = p['w_p2'].T;   self.b_p2_2 = p['b_p2'].reshape(1, out_dim)

    # ---------------------------- Pallas forward ----------------------------
    def forward(self, x_his, eps):
        B, L, C = x_his.shape
        Z, P, O = self.inner_t, self.pred_len, self.out_dim
        L_pad = L + self.K_max - 1
        x_pad = jnp.pad(x_his, ((0, 0), (self.P_left, self.P_right), (0, 0)))
        slab_w = C + 3 * Z                                   # [rec | qz | mean | var]

        xt_pred, slab = pl.pallas_call(
            functools.partial(_tnet_kernel, L=L, K_max=self.K_max),
            out_shape=(
                jax.ShapeDtypeStruct((B, P, O), jnp.float32),
                jax.ShapeDtypeStruct((B, L, slab_w), jnp.float32),
            ),
            grid=(B,),
            in_specs=[
                pl.BlockSpec((1, L_pad, C), lambda b: (b, 0, 0)),
                pl.BlockSpec((1, L, Z), lambda b: (b, 0, 0)),
                pl.BlockSpec((self.K_max, C, C), lambda b: (0, 0, 0)),
                pl.BlockSpec((1, C), lambda b: (0, 0)),
                pl.BlockSpec((C, Z), lambda b: (0, 0)),
                pl.BlockSpec((1, Z), lambda b: (0, 0)),
                pl.BlockSpec((C, Z), lambda b: (0, 0)),
                pl.BlockSpec((1, Z), lambda b: (0, 0)),
                pl.BlockSpec((Z, C), lambda b: (0, 0)),
                pl.BlockSpec((1, C), lambda b: (0, 0)),
                pl.BlockSpec((P, L), lambda b: (0, 0)),
                pl.BlockSpec((P, 1), lambda b: (0, 0)),
                pl.BlockSpec((Z, O), lambda b: (0, 0)),
                pl.BlockSpec((1, O), lambda b: (0, 0)),
            ],
            out_specs=(
                pl.BlockSpec((1, P, O), lambda b: (b, 0, 0)),
                pl.BlockSpec((1, L, slab_w), lambda b: (b, 0, 0)),
            ),
            compiler_params=pltpu.CompilerParams(dimension_semantics=("parallel",)),
        )(x_pad, eps, self.weff, self.beff,
          self.w_loc_t, self.b_loc2, self.w_var_t, self.b_var2,
          self.w_rec_t, self.b_rec2, self.w_p1, self.b_p1_col, self.w_p2_t, self.b_p2_2)

        xt_rec = slab[:, :, :C]
        self._last_qz = slab[:, :, C:C + Z]
        self._last_mean = slab[:, :, C + Z:C + 2 * Z]
        self._last_var = slab[:, :, C + 2 * Z:]

        # TODO(synk): trend_sim, log_Normal_diag/log_Normal_standard and CriticFunc are
        # not defined in the provided source, so elbo_t / mlbo_t (which also depend on a
        # random permutation) are returned as 0.0 placeholders instead of being faked.
        elbo_t = jnp.float32(0.0)
        mlbo_t = jnp.float32(0.0)
        return xt_pred, xt_rec, elbo_t, mlbo_t

    # -------------------- pure-JAX reference (for validation) --------------------
    def reference(self, x_his, eps):
        p = self.p
        xc = jnp.transpose(x_his, (0, 2, 1))                # NCW
        outs = []
        for i in range(self.kernel_max):
            k = 2 ** i
            lp, rp = _torch_same_pad(k)
            y = jax.lax.conv_general_dilated(
                xc, p['w_ms'][i], (1,), [(lp, rp)],
                dimension_numbers=('NCH', 'OIH', 'NCH'))
            outs.append(y + p['b_ms'][i][None, :, None])
        cc = jnp.concatenate(outs, axis=1)
        y = jax.lax.conv_general_dilated(cc, p['w_redu'], (1,), [(0, 0)],
                                         dimension_numbers=('NCH', 'OIH', 'NCH'))
        x_enc = jnp.transpose(y + p['b_redu'][None, :, None], (0, 2, 1))
        mean = x_enc @ p['w_loc'].T + p['b_loc']
        var = jax.nn.softplus(x_enc @ p['w_var'].T + p['b_var'])
        qz = mean + var * eps
        rec = qz @ p['w_rec'].T + p['b_rec']
        p1 = jnp.einsum('pl,blz->bpz', p['w_p1'], qz) + p['b_p1'][None, :, None]
        pred = p1 @ p['w_p2'].T + p['b_p2']
        return pred, rec, qz, mean, var


if __name__ == "__main__":
    B, in_dim, out_dim, seq_len, pred_len, inner_t = 2, 8, 8, 16, 8, 8
    key = jax.random.PRNGKey(0)
    k_param, k_x, k_eps = jax.random.split(key, 3)

    model = TNetPallas(in_dim, out_dim, seq_len, pred_len, inner_t, k_param)
    x_his = jax.random.normal(k_x, (B, seq_len, in_dim), dtype=jnp.float32)
    eps = jax.random.normal(k_eps, (B, seq_len, inner_t), dtype=jnp.float32)

    xt_pred, xt_rec, elbo_t, mlbo_t = model.forward(x_his, eps)
    jax.block_until_ready((xt_pred, xt_rec, elbo_t, mlbo_t))

    r_pred, r_rec, r_qz, r_mean, r_var = model.reference(x_his, eps)
    np.testing.assert_allclose(np.asarray(xt_pred), np.asarray(r_pred), rtol=2e-3, atol=2e-3)
    np.testing.assert_allclose(np.asarray(xt_rec), np.asarray(r_rec), rtol=2e-3, atol=2e-3)
    np.testing.assert_allclose(np.asarray(model._last_qz), np.asarray(r_qz), rtol=2e-3, atol=2e-3)
    np.testing.assert_allclose(np.asarray(model._last_mean), np.asarray(r_mean), rtol=2e-3, atol=2e-3)
    np.testing.assert_allclose(np.asarray(model._last_var), np.asarray(r_var), rtol=2e-3, atol=2e-3)

    print("KERNEL_OK")
</pallas_src>

<mosaic_0001>
module attributes {stable_mosaic.version = 11 : i64} {
  func.func @_tnet_kernel(%arg0: i32, %arg1: memref<1x23x8xf32, #tpu.memory_space<vmem>>, %arg2: memref<1x16x8xf32, #tpu.memory_space<vmem>>, %arg3: memref<8x8x8xf32, #tpu.memory_space<vmem>>, %arg4: memref<1x8xf32, #tpu.memory_space<vmem>>, %arg5: memref<8x8xf32, #tpu.memory_space<vmem>>, %arg6: memref<1x8xf32, #tpu.memory_space<vmem>>, %arg7: memref<8x8xf32, #tpu.memory_space<vmem>>, %arg8: memref<1x8xf32, #tpu.memory_space<vmem>>, %arg9: memref<8x8xf32, #tpu.memory_space<vmem>>, %arg10: memref<1x8xf32, #tpu.memory_space<vmem>>, %arg11: memref<8x16xf32, #tpu.memory_space<vmem>>, %arg12: memref<8x1xf32, #tpu.memory_space<vmem>>, %arg13: memref<8x8xf32, #tpu.memory_space<vmem>>, %arg14: memref<1x8xf32, #tpu.memory_space<vmem>>, %arg15: memref<1x8x8xf32, #tpu.memory_space<vmem>>, %arg16: memref<1x16x32xf32, #tpu.memory_space<vmem>>) attributes {dimension_semantics = [#tpu.dimension_semantics<parallel>], iteration_bounds = array<i64: 2>, scalar_prefetch = 0 : i64, scratch_operands = 0 : i64, tpu.core_type = #tpu.core_type<tc>, window_params = [{transform_indices = @transform_0, window_bounds = array<i64: 1, 23, 8>}, {transform_indices = @transform_1, window_bounds = array<i64: 1, 16, 8>}, {pipeline_mode = #tpu.pipeline_mode<synchronous>, transform_indices = @transform_2, window_bounds = array<i64: 8, 8, 8>}, {pipeline_mode = #tpu.pipeline_mode<synchronous>, transform_indices = @transform_3, window_bounds = array<i64: 1, 8>}, {pipeline_mode = #tpu.pipeline_mode<synchronous>, transform_indices = @transform_4, window_bounds = array<i64: 8, 8>}, {pipeline_mode = #tpu.pipeline_mode<synchronous>, transform_indices = @transform_5, window_bounds = array<i64: 1, 8>}, {pipeline_mode = #tpu.pipeline_mode<synchronous>, transform_indices = @transform_6, window_bounds = array<i64: 8, 8>}, {pipeline_mode = #tpu.pipeline_mode<synchronous>, transform_indices = @transform_7, window_bounds = array<i64: 1, 8>}, {pipeline_mode = #tpu.pipeline_mode<synchronous>, transform_indices = @transform_8, window_bounds = array<i64: 8, 8>}, {pipeline_mode = #tpu.pipeline_mode<synchronous>, transform_indices = @transform_9, window_bounds = array<i64: 1, 8>}, {pipeline_mode = #tpu.pipeline_mode<synchronous>, transform_indices = @transform_10, window_bounds = array<i64: 8, 16>}, {pipeline_mode = #tpu.pipeline_mode<synchronous>, transform_indices = @transform_11, window_bounds = array<i64: 8, 1>}, {pipeline_mode = #tpu.pipeline_mode<synchronous>, transform_indices = @transform_12, window_bounds = array<i64: 8, 8>}, {pipeline_mode = #tpu.pipeline_mode<synchronous>, transform_indices = @transform_13, window_bounds = array<i64: 1, 8>}, {transform_indices = @transform_14, window_bounds = array<i64: 1, 8, 8>}, {transform_indices = @transform_15, window_bounds = array<i64: 1, 16, 32>}]} {
    %c0 = arith.constant 0 : index
    %c0_0 = arith.constant 0 : index
    %0 = vector.load %arg4[%c0, %c0_0] : memref<1x8xf32, #tpu.memory_space<vmem>>, vector<1x8xf32>
    %1 = vector.shape_cast %0 : vector<1x8xf32> to vector<1x8xf32>
    %2 = vector.broadcast %1 : vector<1x8xf32> to vector<16x8xf32>
    %c0_1 = arith.constant 0 : index
    %c0_2 = arith.constant 0 : index
    %c0_3 = arith.constant 0 : index
    %3 = vector.load %arg1[%c0_1, %c0_2, %c0_3] : memref<1x23x8xf32, #tpu.memory_space<vmem>>, vector<1x16x8xf32>
    %4 = vector.shape_cast %3 : vector<1x16x8xf32> to vector<16x8xf32>
    %c0_4 = arith.constant 0 : index
    %c0_5 = arith.constant 0 : index
    %c0_6 = arith.constant 0 : index
    %5 = vector.load %arg3[%c0_4, %c0_5, %c0_6] : memref<8x8x8xf32, #tpu.memory_space<vmem>>, vector<1x8x8xf32>
    %6 = vector.shape_cast %5 : vector<1x8x8xf32> to vector<8x8xf32>
    %cst = arith.constant dense<0.000000e+00> : vector<16x8xf32>
    %7 = tpu.matmul %4, %6, %cst {dimension_numbers = #tpu.dot_dimension_numbers<[1], [0], [0], [1], [0, 0, 1, 1], [], []>} : vector<16x8xf32>, vector<8x8xf32>, vector<16x8xf32> -> vector<16x8xf32>
    %8 = arith.addf %2, %7 : vector<16x8xf32>
    %c0_7 = arith.constant 0 : index
    %c1 = arith.constant 1 : index
    %c0_8 = arith.constant 0 : index
    %9 = vector.load %arg1[%c0_7, %c1, %c0_8] : memref<1x23x8xf32, #tpu.memory_space<vmem>>, vector<1x16x8xf32>
    %10 = vector.shape_cast %9 : vector<1x16x8xf32> to vector<16x8xf32>
    %c1_9 = arith.constant 1 : index
    %c0_10 = arith.constant 0 : index
    %c0_11 = arith.constant 0 : index
    %11 = vector.load %arg3[%c1_9, %c0_10, %c0_11] : memref<8x8x8xf32, #tpu.memory_space<vmem>>, vector<1x8x8xf32>
    %12 = vector.shape_cast %11 : vector<1x8x8xf32> to vector<8x8xf32>
    %cst_12 = arith.constant dense<0.000000e+00> : vector<16x8xf32>
    %13 = tpu.matmul %10, %12, %cst_12 {dimension_numbers = #tpu.dot_dimension_numbers<[1], [0], [0], [1], [0, 0, 1, 1], [], []>} : vector<16x8xf32>, vector<8x8xf32>, vector<16x8xf32> -> vector<16x8xf32>
    %14 = arith.addf %8, %13 : vector<16x8xf32>
    %c0_13 = arith.constant 0 : index
    %c2 = arith.constant 2 : index
    %c0_14 = arith.constant 0 : index
    %15 = vector.load %arg1[%c0_13, %c2, %c0_14] : memref<1x23x8xf32, #tpu.memory_space<vmem>>, vector<1x16x8xf32>
    %16 = vector.shape_cast %15 : vector<1x16x8xf32> to vector<16x8xf32>
    %c2_15 = arith.constant 2 : index
    %c0_16 = arith.constant 0 : index
    %c0_17 = arith.constant 0 : index
    %17 = vector.load %arg3[%c2_15, %c0_16, %c0_17] : memref<8x8x8xf32, #tpu.memory_space<vmem>>, vector<1x8x8xf32>
    %18 = vector.shape_cast %17 : vector<1x8x8xf32> to vector<8x8xf32>
    %cst_18 = arith.constant dense<0.000000e+00> : vector<16x8xf32>
    %19 = tpu.matmul %16, %18, %cst_18 {dimension_numbers = #tpu.dot_dimension_numbers<[1], [0], [0], [1], [0, 0, 1, 1], [], []>} : vector<16x8xf32>, vector<8x8xf32>, vector<16x8xf32> -> vector<16x8xf32>
    %20 = arith.addf %14, %19 : vector<16x8xf32>
    %c0_19 = arith.constant 0 : index
    %c3 = arith.constant 3 : index
    %c0_20 = arith.constant 0 : index
    %21 = vector.load %arg1[%c0_19, %c3, %c0_20] : memref<1x23x8xf32, #tpu.memory_space<vmem>>, vector<1x16x8xf32>
    %22 = vector.shape_cast %21 : vector<1x16x8xf32> to vector<16x8xf32>
    %c3_21 = arith.constant 3 : index
    %c0_22 = arith.constant 0 : index
    %c0_23 = arith.constant 0 : index
    %23 = vector.load %arg3[%c3_21, %c0_22, %c0_23] : memref<8x8x8xf32, #tpu.memory_space<vmem>>, vector<1x8x8xf32>
    %24 = vector.shape_cast %23 : vector<1x8x8xf32> to vector<8x8xf32>
    %cst_24 = arith.constant dense<0.000000e+00> : vector<16x8xf32>
    %25 = tpu.matmul %22, %24, %cst_24 {dimension_numbers = #tpu.dot_dimension_numbers<[1], [0], [0], [1], [0, 0, 1, 1], [], []>} : vector<16x8xf32>, vector<8x8xf32>, vector<16x8xf32> -> vector<16x8xf32>
    %26 = arith.addf %20, %25 : vector<16x8xf32>
    %c0_25 = arith.constant 0 : index
    %c4 = arith.constant 4 : index
    %c0_26 = arith.constant 0 : index
    %27 = vector.load %arg1[%c0_25, %c4, %c0_26] : memref<1x23x8xf32, #tpu.memory_space<vmem>>, vector<1x16x8xf32>
    %28 = vector.shape_cast %27 : vector<1x16x8xf32> to vector<16x8xf32>
    %c4_27 = arith.constant 4 : index
    %c0_28 = arith.constant 0 : index
    %c0_29 = arith.constant 0 : index
    %29 = vector.load %arg3[%c4_27, %c0_28, %c0_29] : memref<8x8x8xf32, #tpu.memory_space<vmem>>, vector<1x8x8xf32>
    %30 = vector.shape_cast %29 : vector<1x8x8xf32> to vector<8x8xf32>
    %cst_30 = arith.constant dense<0.000000e+00> : vector<16x8xf32>
    %31 = tpu.matmul %28, %30, %cst_30 {dimension_numbers = #tpu.dot_dimension_numbers<[1], [0], [0], [1], [0, 0, 1, 1], [], []>} : vector<16x8xf32>, vector<8x8xf32>, vector<16x8xf32> -> vector<16x8xf32>
    %32 = arith.addf %26, %31 : vector<16x8xf32>
    %c0_31 = arith.constant 0 : index
    %c5 = arith.constant 5 : index
    %c0_32 = arith.constant 0 : index
    %33 = vector.load %arg1[%c0_31, %c5, %c0_32] : memref<1x23x8xf32, #tpu.memory_space<vmem>>, vector<1x16x8xf32>
    %34 = vector.shape_cast %33 : vector<1x16x8xf32> to vector<16x8xf32>
    %c5_33 = arith.constant 5 : index
    %c0_34 = arith.constant 0 : index
    %c0_35 = arith.constant 0 : index
    %35 = vector.load %arg3[%c5_33, %c0_34, %c0_35] : memref<8x8x8xf32, #tpu.memory_space<vmem>>, vector<1x8x8xf32>
    %36 = vector.shape_cast %35 : vector<1x8x8xf32> to vector<8x8xf32>
    %cst_36 = arith.constant dense<0.000000e+00> : vector<16x8xf32>
    %37 = tpu.matmul %34, %36, %cst_36 {dimension_numbers = #tpu.dot_dimension_numbers<[1], [0], [0], [1], [0, 0, 1, 1], [], []>} : vector<16x8xf32>, vector<8x8xf32>, vector<16x8xf32> -> vector<16x8xf32>
    %38 = arith.addf %32, %37 : vector<16x8xf32>
    %c0_37 = arith.constant 0 : index
    %c6 = arith.constant 6 : index
    %c0_38 = arith.constant 0 : index
    %39 = vector.load %arg1[%c0_37, %c6, %c0_38] : memref<1x23x8xf32, #tpu.memory_space<vmem>>, vector<1x16x8xf32>
    %40 = vector.shape_cast %39 : vector<1x16x8xf32> to vector<16x8xf32>
    %c6_39 = arith.constant 6 : index
    %c0_40 = arith.constant 0 : index
    %c0_41 = arith.constant 0 : index
    %41 = vector.load %arg3[%c6_39, %c0_40, %c0_41] : memref<8x8x8xf32, #tpu.memory_space<vmem>>, vector<1x8x8xf32>
    %42 = vector.shape_cast %41 : vector<1x8x8xf32> to vector<8x8xf32>
    %cst_42 = arith.constant dense<0.000000e+00> : vector<16x8xf32>
    %43 = tpu.matmul %40, %42, %cst_42 {dimension_numbers = #tpu.dot_dimension_numbers<[1], [0], [0], [1], [0, 0, 1, 1], [], []>} : vector<16x8xf32>, vector<8x8xf32>, vector<16x8xf32> -> vector<16x8xf32>
    %44 = arith.addf %38, %43 : vector<16x8xf32>
    %c0_43 = arith.constant 0 : index
    %c7 = arith.constant 7 : index
    %c0_44 = arith.constant 0 : index
    %45 = vector.load %arg1[%c0_43, %c7, %c0_44] : memref<1x23x8xf32, #tpu.memory_space<vmem>>, vector<1x16x8xf32>
    %46 = vector.shape_cast %45 : vector<1x16x8xf32> to vector<16x8xf32>
    %c7_45 = arith.constant 7 : index
    %c0_46 = arith.constant 0 : index
    %c0_47 = arith.constant 0 : index
    %47 = vector.load %arg3[%c7_45, %c0_46, %c0_47] : memref<8x8x8xf32, #tpu.memory_space<vmem>>, vector<1x8x8xf32>
    %48 = vector.shape_cast %47 : vector<1x8x8xf32> to vector<8x8xf32>
    %cst_48 = arith.constant dense<0.000000e+00> : vector<16x8xf32>
    %49 = tpu.matmul %46, %48, %cst_48 {dimension_numbers = #tpu.dot_dimension_numbers<[1], [0], [0], [1], [0, 0, 1, 1], [], []>} : vector<16x8xf32>, vector<8x8xf32>, vector<16x8xf32> -> vector<16x8xf32>
    %50 = arith.addf %44, %49 : vector<16x8xf32>
    %c0_49 = arith.constant 0 : index
    %c0_50 = arith.constant 0 : index
    %51 = vector.load %arg5[%c0_49, %c0_50] : memref<8x8xf32, #tpu.memory_space<vmem>>, vector<8x8xf32>
    %cst_51 = arith.constant dense<0.000000e+00> : vector<16x8xf32>
    %52 = tpu.matmul %50, %51, %cst_51 {dimension_numbers = #tpu.dot_dimension_numbers<[1], [0], [0], [1], [0, 0, 1, 1], [], []>} : vector<16x8xf32>, vector<8x8xf32>, vector<16x8xf32> -> vector<16x8xf32>
    %c0_52 = arith.constant 0 : index
    %c0_53 = arith.constant 0 : index
    %53 = vector.load %arg6[%c0_52, %c0_53] : memref<1x8xf32, #tpu.memory_space<vmem>>, vector<1x8xf32>
    %54 = vector.broadcast %53 : vector<1x8xf32> to vector<16x8xf32>
    %55 = arith.addf %52, %54 : vector<16x8xf32>
    %c0_54 = arith.constant 0 : index
    %c0_55 = arith.constant 0 : index
    %56 = vector.load %arg7[%c0_54, %c0_55] : memref<8x8xf32, #tpu.memory_space<vmem>>, vector<8x8xf32>
    %cst_56 = arith.constant dense<0.000000e+00> : vector<16x8xf32>
    %57 = tpu.matmul %50, %56, %cst_56 {dimension_numbers = #tpu.dot_dimension_numbers<[1], [0], [0], [1], [0, 0, 1, 1], [], []>} : vector<16x8xf32>, vector<8x8xf32>, vector<16x8xf32> -> vector<16x8xf32>
    %c0_57 = arith.constant 0 : index
    %c0_58 = arith.constant 0 : index
    %58 = vector.load %arg8[%c0_57, %c0_58] : memref<1x8xf32, #tpu.memory_space<vmem>>, vector<1x8xf32>
    %59 = vector.broadcast %58 : vector<1x8xf32> to vector<16x8xf32>
    %60 = arith.addf %57, %59 : vector<16x8xf32>
    %cst_59 = arith.constant 0.000000e+00 : f32
    %61 = vector.broadcast %cst_59 : f32 to vector<16x8xf32>
    %62 = arith.maximumf %60, %61 : vector<16x8xf32>
    %63 = math.absf %60 : vector<16x8xf32>
    %cst_60 = arith.constant 0.000000e+00 : f32
    %64 = vector.broadcast %cst_60 : f32 to vector<16x8xf32>
    %65 = arith.subf %64, %63 : vector<16x8xf32>
    %66 = math.exp %65 : vector<16x8xf32>
    %67 = math.log1p %66 : vector<16x8xf32>
    %68 = arith.addf %62, %67 : vector<16x8xf32>
    %c0_61 = arith.constant 0 : index
    %c0_62 = arith.constant 0 : index
    %c0_63 = arith.constant 0 : index
    %69 = vector.load %arg2[%c0_61, %c0_62, %c0_63] : memref<1x16x8xf32, #tpu.memory_space<vmem>>, vector<1x16x8xf32>
    %70 = vector.shape_cast %69 : vector<1x16x8xf32> to vector<16x8xf32>
    %71 = arith.mulf %68, %70 : vector<16x8xf32>
    %72 = arith.addf %55, %71 : vector<16x8xf32>
    %c0_64 = arith.constant 0 : index
    %c0_65 = arith.constant 0 : index
    %73 = vector.load %arg9[%c0_64, %c0_65] : memref<8x8xf32, #tpu.memory_space<vmem>>, vector<8x8xf32>
    %cst_66 = arith.constant dense<0.000000e+00> : vector<16x8xf32>
    %74 = tpu.matmul %72, %73, %cst_66 {dimension_numbers = #tpu.dot_dimension_numbers<[1], [0], [0], [1], [0, 0, 1, 1], [], []>} : vector<16x8xf32>, vector<8x8xf32>, vector<16x8xf32> -> vector<16x8xf32>
    %c0_67 = arith.constant 0 : index
    %c0_68 = arith.constant 0 : index
    %75 = vector.load %arg10[%c0_67, %c0_68] : memref<1x8xf32, #tpu.memory_space<vmem>>, vector<1x8xf32>
    %76 = vector.broadcast %75 : vector<1x8xf32> to vector<16x8xf32>
    %77 = arith.addf %74, %76 : vector<16x8xf32>
    %c0_69 = arith.constant 0 : index
    %c0_70 = arith.constant 0 : index
    %78 = vector.load %arg11[%c0_69, %c0_70] : memref<8x16xf32, #tpu.memory_space<vmem>>, vector<8x16xf32>
    %cst_71 = arith.constant dense<0.000000e+00> : vector<8x8xf32>
    %79 = tpu.matmul %78, %72, %cst_71 {dimension_numbers = #tpu.dot_dimension_numbers<[1], [0], [0], [1], [0, 0, 1, 1], [], []>} : vector<8x16xf32>, vector<16x8xf32>, vector<8x8xf32> -> vector<8x8xf32>
    %c0_72 = arith.constant 0 : index
    %c0_73 = arith.constant 0 : index
    %80 = vector.load %arg12[%c0_72, %c0_73] : memref<8x1xf32, #tpu.memory_space<vmem>>, vector<8x1xf32>
    %81 = vector.broadcast %80 : vector<8x1xf32> to vector<8x8xf32>
    %82 = arith.addf %79, %81 : vector<8x8xf32>
    %c0_74 = arith.constant 0 : index
    %c0_75 = arith.constant 0 : index
    %83 = vector.load %arg13[%c0_74, %c0_75] : memref<8x8xf32, #tpu.memory_space<vmem>>, vector<8x8xf32>
    %cst_76 = arith.constant dense<0.000000e+00> : vector<8x8xf32>
    %84 = tpu.matmul %82, %83, %cst_76 {dimension_numbers = #tpu.dot_dimension_numbers<[1], [0], [0], [1], [0, 0, 1, 1], [], []>} : vector<8x8xf32>, vector<8x8xf32>, vector<8x8xf32> -> vector<8x8xf32>
    %c0_77 = arith.constant 0 : index
    %c0_78 = arith.constant 0 : index
    %85 = vector.load %arg14[%c0_77, %c0_78] : memref<1x8xf32, #tpu.memory_space<vmem>>, vector<1x8xf32>
    %86 = vector.broadcast %85 : vector<1x8xf32> to vector<8x8xf32>
    %87 = arith.addf %84, %86 : vector<8x8xf32>
    %c0_79 = arith.constant 0 : index
    %c0_80 = arith.constant 0 : index
    %c0_81 = arith.constant 0 : index
    %88 = vector.load %arg15[%c0_79, %c0_80, %c0_81] : memref<1x8x8xf32, #tpu.memory_space<vmem>>, vector<1x8x8xf32>
    %89 = vector.shape_cast %88 : vector<1x8x8xf32> to vector<8x8xf32>
    %90 = vector.shape_cast %87 : vector<8x8xf32> to vector<1x8x8xf32>
    tpu.vector_store %arg15[%c0_79, %c0_80, %c0_81], %90 {strides = array<i32>} : memref<1x8x8xf32, #tpu.memory_space<vmem>>, vector<1x8x8xf32>,
    %91 = tpu.concatenate %77, %72, %55, %68 in 1 : vector<16x8xf32>, vector<16x8xf32>, vector<16x8xf32>, vector<16x8xf32> -> vector<16x32xf32>
    %c0_82 = arith.constant 0 : index
    %c0_83 = arith.constant 0 : index
    %c0_84 = arith.constant 0 : index
    %92 = vector.load %arg16[%c0_82, %c0_83, %c0_84] : memref<1x16x32xf32, #tpu.memory_space<vmem>>, vector<1x16x32xf32>
    %93 = vector.shape_cast %92 : vector<1x16x32xf32> to vector<16x32xf32>
    %94 = vector.shape_cast %91 : vector<16x32xf32> to vector<1x16x32xf32>
    tpu.vector_store %arg16[%c0_82, %c0_83, %c0_84], %94 {strides = array<i32>} : memref<1x16x32xf32, #tpu.memory_space<vmem>>, vector<1x16x32xf32>,
    return
  }
  func.func @transform_0(%arg0: i32) -> (i32, i32, i32) {
    %c0_i32 = arith.constant 0 : i32
    %c0_i32_0 = arith.constant 0 : i32
    %c0_i32_1 = arith.constant 0 : i32
    return %arg0, %c0_i32, %c0_i32_0 : i32, i32, i32
  }
  func.func @transform_1(%arg0: i32) -> (i32, i32, i32) {
    %c0_i32 = arith.constant 0 : i32
    %c0_i32_0 = arith.constant 0 : i32
    %c0_i32_1 = arith.constant 0 : i32
    return %arg0, %c0_i32, %c0_i32_0 : i32, i32, i32
  }
  func.func @transform_2(%arg0: i32) -> (i32, i32, i32) {
    %c0_i32 = arith.constant 0 : i32
    %c0_i32_0 = arith.constant 0 : i32
    %c0_i32_1 = arith.constant 0 : i32
    %c0_i32_2 = arith.constant 0 : i32
    return %c0_i32, %c0_i32_0, %c0_i32_1 : i32, i32, i32
  }
  func.func @transform_3(%arg0: i32) -> (i32, i32) {
    %c0_i32 = arith.constant 0 : i32
    %c0_i32_0 = arith.constant 0 : i32
    %c0_i32_1 = arith.constant 0 : i32
    return %c0_i32, %c0_i32_0 : i32, i32
  }
  func.func @transform_4(%arg0: i32) -> (i32, i32) {
    %c0_i32 = arith.constant 0 : i32
    %c0_i32_0 = arith.constant 0 : i32
    %c0_i32_1 = arith.constant 0 : i32
    return %c0_i32, %c0_i32_0 : i32, i32
  }
  func.func @transform_5(%arg0: i32) -> (i32, i32) {
    %c0_i32 = arith.constant 0 : i32
    %c0_i32_0 = arith.constant 0 : i32
    %c0_i32_1 = arith.constant 0 : i32
    return %c0_i32, %c0_i32_0 : i32, i32
  }
  func.func @transform_6(%arg0: i32) -> (i32, i32) {
    %c0_i32 = arith.constant 0 : i32
    %c0_i32_0 = arith.constant 0 : i32
    %c0_i32_1 = arith.constant 0 : i32
    return %c0_i32, %c0_i32_0 : i32, i32
  }
  func.func @transform_7(%arg0: i32) -> (i32, i32) {
    %c0_i32 = arith.constant 0 : i32
    %c0_i32_0 = arith.constant 0 : i32
    %c0_i32_1 = arith.constant 0 : i32
    return %c0_i32, %c0_i32_0 : i32, i32
  }
  func.func @transform_8(%arg0: i32) -> (i32, i32) {
    %c0_i32 = arith.constant 0 : i32
    %c0_i32_0 = arith.constant 0 : i32
    %c0_i32_1 = arith.constant 0 : i32
    return %c0_i32, %c0_i32_0 : i32, i32
  }
  func.func @transform_9(%arg0: i32) -> (i32, i32) {
    %c0_i32 = arith.constant 0 : i32
    %c0_i32_0 = arith.constant 0 : i32
    %c0_i32_1 = arith.constant 0 : i32
    return %c0_i32, %c0_i32_0 : i32, i32
  }
  func.func @transform_10(%arg0: i32) -> (i32, i32) {
    %c0_i32 = arith.constant 0 : i32
    %c0_i32_0 = arith.constant 0 : i32
    %c0_i32_1 = arith.constant 0 : i32
    return %c0_i32, %c0_i32_0 : i32, i32
  }
  func.func @transform_11(%arg0: i32) -> (i32, i32) {
    %c0_i32 = arith.constant 0 : i32
    %c0_i32_0 = arith.constant 0 : i32
    %c0_i32_1 = arith.constant 0 : i32
    return %c0_i32, %c0_i32_0 : i32, i32
  }
  func.func @transform_12(%arg0: i32) -> (i32, i32) {
    %c0_i32 = arith.constant 0 : i32
    %c0_i32_0 = arith.constant 0 : i32
    %c0_i32_1 = arith.constant 0 : i32
    return %c0_i32, %c0_i32_0 : i32, i32
  }
  func.func @transform_13(%arg0: i32) -> (i32, i32) {
    %c0_i32 = arith.constant 0 : i32
    %c0_i32_0 = arith.constant 0 : i32
    %c0_i32_1 = arith.constant 0 : i32
    return %c0_i32, %c0_i32_0 : i32, i32
  }
  func.func @transform_14(%arg0: i32) -> (i32, i32, i32) {
    %c0_i32 = arith.constant 0 : i32
    %c0_i32_0 = arith.constant 0 : i32
    %c0_i32_1 = arith.constant 0 : i32
    return %arg0, %c0_i32, %c0_i32_0 : i32, i32, i32
  }
  func.func @transform_15(%arg0: i32) -> (i32, i32, i32) {
    %c0_i32 = arith.constant 0 : i32
    %c0_i32_0 = arith.constant 0 : i32
    %c0_i32_1 = arith.constant 0 : i32
    return %arg0, %c0_i32, %c0_i32_0 : i32, i32, i32
  }
}

</mosaic_0001>

<llo_original>
// kernel: tpu_custom_call.1
$region0: #{tpu_custom_call.1}
  #allocation0 [shape = 'u32[]', space=smem, size = 0x4, offset = 0x4, fixed_abs, tag = 'smem constant byte address 0x4 - core index']
  #allocation1 [shape = 'u32[72,128]{1,0:T(1,128)}', space=vmem, size = 0x9000, scoped, tag = 'internal scratch']
  %s0 = inlined_call_operand.vmem [shape: f32[2,23,8], index: 0, kind: input, shape index: {}]
  %s1 = inlined_call_operand.vmem [shape: f32[2,16,8], index: 1, kind: input, shape index: {}]
  %s2 = inlined_call_operand.vmem [shape: f32[8,8,8], index: 2, kind: input, shape index: {}]
  %s3 = inlined_call_operand.vmem [shape: f32[1,8], index: 3, kind: input, shape index: {}]
  %s4 = inlined_call_operand.vmem [shape: f32[8,8], index: 4, kind: input, shape index: {}]
  %s5 = inlined_call_operand.vmem [shape: f32[1,8], index: 5, kind: input, shape index: {}]
  %s6 = inlined_call_operand.vmem [shape: f32[8,8], index: 6, kind: input, shape index: {}]
  %s7 = inlined_call_operand.vmem [shape: f32[1,8], index: 7, kind: input, shape index: {}]
  %s8 = inlined_call_operand.vmem [shape: f32[8,8], index: 8, kind: input, shape index: {}]
  %s9 = inlined_call_operand.vmem [shape: f32[1,8], index: 9, kind: input, shape index: {}]
  %s10 = inlined_call_operand.vmem [shape: f32[8,16], index: 10, kind: input, shape index: {}]
  %s11 = inlined_call_operand.vmem [shape: f32[8,1], index: 11, kind: input, shape index: {}]
  %s12 = inlined_call_operand.vmem [shape: f32[8,8], index: 12, kind: input, shape index: {}]
  %s13 = inlined_call_operand.vmem [shape: f32[1,8], index: 13, kind: input, shape index: {}]
  %s14 = inlined_call_operand.hbm [shape: f32[2,8,8], index: 14, kind: output, shape index: {0}]
  %s15 = inlined_call_operand.hbm [shape: f32[2,16,32], index: 15, kind: output, shape index: {1}]
  %16 = xla_tuple %s14, %s15
  %s17 = sld [smem:[#allocation0]]
  $region97: #{tpu_custom_call.1} parent=0
    _
  %s19 = ssub.s32 1, %s17
  %s20 = scalar_select 0, %s19, %s17
  $region1: #{tpu_custom_call.1} parent=0
    #allocation2 [shape = 'u8[8192]{0}', space=vmem, size = 0x2000, scoped, tag = 'output window, operand 0']
    #allocation3 [shape = 's32[2]{0}', space=sflag, size = 0x8, scoped, tag = 'scoped memory for tpu_custom_call.1']
    #allocation4 [shape = 'u8[16384]{0}', space=vmem, size = 0x4000, scoped, tag = 'output window, operand 1']
    #allocation5 [shape = 's32[2]{0}', space=sflag, size = 0x8, scoped, tag = 'scoped memory for tpu_custom_call.1']
    %21 = vsyncpa [#allocation3], 0
    %s22 = scalar_lea.sflag [#allocation3], 1
    %23 = vsyncpa %s22, 0
    %24 = vsyncpa [#allocation5], 0
    %s25 = scalar_lea.sflag [#allocation5], 1
    %26 = vsyncpa %s25, 0
    loop: start=0, step=1, limit=4
    $region2: #{tpu_custom_call.1} parent=1 // loop_pre_header
      _
    $region3: #{tpu_custom_call.1} parent=1 // loop_header
      %s28 = sphi 0, %s32
      %p29 = scmp.ge.s32.totalorder %s28, 4
      %s38 = sphi 0, %s40
      %s41 = sphi 0, %s38
      %s42 = sphi 0, %s41
      %s58 = sphi 0, %s42
      %s64 = sphi 0, %s66
      %s67 = sphi 0, %s64
      %s68 = sphi 0, %s67
      %s84 = sphi 0, %s68
      %s88 = sphi 0, %s88
      %s90 = sphi 0, %s88
      %s91 = sphi 0, %s90
      %s105 = sphi 0, %s91
      %s109 = sphi 0, %s109
      %s111 = sphi 0, %s109
      %s112 = sphi 0, %s111
      %s126 = sphi 0, %s112
      %s130 = sphi 0, %s130
      %s132 = sphi 0, %s130
      %s133 = sphi 0, %s132
      %s147 = sphi 0, %s133
      %s151 = sphi 0, %s151
      %s153 = sphi 0, %s151
      %s154 = sphi 0, %s153
      %s168 = sphi 0, %s154
      %s172 = sphi 0, %s172
      %s174 = sphi 0, %s172
      %s175 = sphi 0, %s174
      %s189 = sphi 0, %s175
      %s193 = sphi 0, %s193
      %s195 = sphi 0, %s193
      %s196 = sphi 0, %s195
      %s210 = sphi 0, %s196
      %s214 = sphi 0, %s214
      %s216 = sphi 0, %s214
      %s217 = sphi 0, %s216
      %s231 = sphi 0, %s217
      %s235 = sphi 0, %s235
      %s237 = sphi 0, %s235
      %s238 = sphi 0, %s237
      %s252 = sphi 0, %s238
      %s256 = sphi 0, %s256
      %s258 = sphi 0, %s256
      %s259 = sphi 0, %s258
      %s273 = sphi 0, %s259
      %s277 = sphi 0, %s277
      %s279 = sphi 0, %s277
      %s280 = sphi 0, %s279
      %s294 = sphi 0, %s280
      %s298 = sphi 0, %s298
      %s300 = sphi 0, %s298
      %s301 = sphi 0, %s300
      %s315 = sphi 0, %s301
      %s319 = sphi 0, %s319
      %s321 = sphi 0, %s319
      %s322 = sphi 0, %s321
      %s336 = sphi 0, %s322
      %s342 = sphi 0, %s344
      %s345 = sphi 0, %s342
      %s346 = sphi 0, %s345
      %s362 = sphi 0, %s346
      %s368 = sphi 0, %s370
      %s371 = sphi 0, %s368
      %s372 = sphi 0, %s371
      %s388 = sphi 0, %s372
    $region4: #{tpu_custom_call.1} parent=1 // loop_header_branch
      %31 = sbr.rel (%p29) target = $region8
    $region5: #{tpu_custom_call.1} parent=1 // loop_body
      %s33 = ssub.s32 %s28, 1
      %s34 = ssub.s32 %s28, 2
      %s35 = sadd.s32 %s28, 1
      %s36 = ssub.s32 %s28, %s35
      %p37 = scmp.eq.s32.totalorder %s36, 0
      %s39 = sadd.s32 %s38, 1
      %s40 = scalar_select %p37, %s38, %s39
      %p43 = pneg %p37
      %p44 = scmp.eq.s32.totalorder %s28, 1
      %p45 = por %p43, %p44
      %p46 = scmp.ne.s32.totalorder %s38, %s41
      %p47 = scmp.eq.s32.totalorder %s28, 0
      %p48 = por %p46, %p47
      %p49 = scmp.ne.s32.totalorder %s38, %s41
      %p50 = scmp.eq.s32.totalorder %s33, 1
      %p51 = por %p49, %p50
      %p52 = scmp.ne.s32.totalorder %s41, %s42
      %p53 = scmp.eq.s32.totalorder %s33, 0
      %p54 = por %p52, %p53
      %p55 = scmp.ne.s32.totalorder %s41, %s42
      %p56 = scmp.eq.s32.totalorder %s34, 1
      %p57 = por %p55, %p56
      %p59 = scmp.ne.s32.totalorder %s42, %s58
      %p60 = scmp.eq.s32.totalorder %s34, 0
      %p61 = por %p59, %p60
      %s62 = ssub.s32 %s28, %s35
      %p63 = scmp.eq.s32.totalorder %s62, 0
      %s65 = sadd.s32 %s64, 1
      %s66 = scalar_select %p63, %s64, %s65
      %p69 = pneg %p63
      %p70 = scmp.eq.s32.totalorder %s28, 1
      %p71 = por %p69, %p70
      %p72 = scmp.ne.s32.totalorder %s64, %s67
      %p73 = scmp.eq.s32.totalorder %s28, 0
      %p74 = por %p72, %p73
      %p75 = scmp.ne.s32.totalorder %s64, %s67
      %p76 = scmp.eq.s32.totalorder %s33, 1
      %p77 = por %p75, %p76
      %p78 = scmp.ne.s32.totalorder %s67, %s68
      %p79 = scmp.eq.s32.totalorder %s33, 0
      %p80 = por %p78, %p79
      %p81 = scmp.ne.s32.totalorder %s67, %s68
      %p82 = scmp.eq.s32.totalorder %s34, 1
      %p83 = por %p81, %p82
      %p85 = scmp.ne.s32.totalorder %s68, %s84
      %p86 = scmp.eq.s32.totalorder %s34, 0
      %p87 = por %p85, %p86
      %s89 = sadd.s32 %s88, 1
      %p92 = scmp.eq.s32.totalorder %s28, 1
      %p93 = scmp.ne.s32.totalorder %s88, %s90
      %p94 = scmp.eq.s32.totalorder %s28, 0
      %p95 = por %p93, %p94
      %p96 = scmp.ne.s32.totalorder %s88, %s90
      %p97 = scmp.eq.s32.totalorder %s33, 1
      %p98 = por %p96, %p97
      %p99 = scmp.ne.s32.totalorder %s90, %s91
      %p100 = scmp.eq.s32.totalorder %s33, 0
      %p101 = por %p99, %p100
      %p102 = scmp.ne.s32.totalorder %s90, %s91
      %p103 = scmp.eq.s32.totalorder %s34, 1
      %p104 = por %p102, %p103
      %p106 = scmp.ne.s32.totalorder %s91, %s105
      %p107 = scmp.eq.s32.totalorder %s34, 0
      %p108 = por %p106, %p107
      %s110 = sadd.s32 %s109, 1
      %p113 = scmp.eq.s32.totalorder %s28, 1
      %p114 = scmp.ne.s32.totalorder %s109, %s111
      %p115 = scmp.eq.s32.totalorder %s28, 0
      %p116 = por %p114, %p115
      %p117 = scmp.ne.s32.totalorder %s109, %s111
      %p118 = scmp.eq.s32.totalorder %s33, 1
      %p119 = por %p117, %p118
      %p120 = scmp.ne.s32.totalorder %s111, %s112
      %p121 = scmp.eq.s32.totalorder %s33, 0
      %p122 = por %p120, %p121
      %p123 = scmp.ne.s32.totalorder %s111, %s112
      %p124 = scmp.eq.s32.totalorder %s34, 1
      %p125 = por %p123, %p124
      %p127 = scmp.ne.s32.totalorder %s112, %s126
      %p128 = scmp.eq.s32.totalorder %s34, 0
      %p129 = por %p127, %p128
      %s131 = sadd.s32 %s130, 1
      %p134 = scmp.eq.s32.totalorder %s28, 1
      %p135 = scmp.ne.s32.totalorder %s130, %s132
      %p136 = scmp.eq.s32.totalorder %s28, 0
      %p137 = por %p135, %p136
      %p138 = scmp.ne.s32.totalorder %s130, %s132
      %p139 = scmp.eq.s32.totalorder %s33, 1
      %p140 = por %p138, %p139
      %p141 = scmp.ne.s32.totalorder %s132, %s133
      %p142 = scmp.eq.s32.totalorder %s33, 0
      %p143 = por %p141, %p142
      %p144 = scmp.ne.s32.totalorder %s132, %s133
      %p145 = scmp.eq.s32.totalorder %s34, 1
      %p146 = por %p144, %p145
      %p148 = scmp.ne.s32.totalorder %s133, %s147
      %p149 = scmp.eq.s32.totalorder %s34, 0
      %p150 = por %p148, %p149
      %s152 = sadd.s32 %s151, 1
      %p155 = scmp.eq.s32.totalorder %s28, 1
      %p156 = scmp.ne.s32.totalorder %s151, %s153
      %p157 = scmp.eq.s32.totalorder %s28, 0
      %p158 = por %p156, %p157
      %p159 = scmp.ne.s32.totalorder %s151, %s153
      %p160 = scmp.eq.s32.totalorder %s33, 1
      %p161 = por %p159, %p160
      %p162 = scmp.ne.s32.totalorder %s153, %s154
      %p163 = scmp.eq.s32.totalorder %s33, 0
      %p164 = por %p162, %p163
      %p165 = scmp.ne.s32.totalorder %s153, %s154
      %p166 = scmp.eq.s32.totalorder %s34, 1
      %p167 = por %p165, %p166
      %p169 = scmp.ne.s32.totalorder %s154, %s168
      %p170 = scmp.eq.s32.totalorder %s34, 0
      %p171 = por %p169, %p170
      %s173 = sadd.s32 %s172, 1
      %p176 = scmp.eq.s32.totalorder %s28, 1
      %p177 = scmp.ne.s32.totalorder %s172, %s174
      %p178 = scmp.eq.s32.totalorder %s28, 0
      %p179 = por %p177, %p178
      %p180 = scmp.ne.s32.totalorder %s172, %s174
      %p181 = scmp.eq.s32.totalorder %s33, 1
      %p182 = por %p180, %p181
      %p183 = scmp.ne.s32.totalorder %s174, %s175
      %p184 = scmp.eq.s32.totalorder %s33, 0
      %p185 = por %p183, %p184
      %p186 = scmp.ne.s32.totalorder %s174, %s175
      %p187 = scmp.eq.s32.totalorder %s34, 1
      %p188 = por %p186, %p187
      %p190 = scmp.ne.s32.totalorder %s175, %s189
      %p191 = scmp.eq.s32.totalorder %s34, 0
      %p192 = por %p190, %p191
      %s194 = sadd.s32 %s193, 1
      %p197 = scmp.eq.s32.totalorder %s28, 1
      %p198 = scmp.ne.s32.totalorder %s193, %s195
      %p199 = scmp.eq.s32.totalorder %s28, 0
      %p200 = por %p198, %p199
      %p201 = scmp.ne.s32.totalorder %s193, %s195
      %p202 = scmp.eq.s32.totalorder %s33, 1
      %p203 = por %p201, %p202
      %p204 = scmp.ne.s32.totalorder %s195, %s196
      %p205 = scmp.eq.s32.totalorder %s33, 0
      %p206 = por %p204, %p205
      %p207 = scmp.ne.s32.totalorder %s195, %s196
      %p208 = scmp.eq.s32.totalorder %s34, 1
      %p209 = por %p207, %p208
      %p211 = scmp.ne.s32.totalorder %s196, %s210
      %p212 = scmp.eq.s32.totalorder %s34, 0
      %p213 = por %p211, %p212
      %s215 = sadd.s32 %s214, 1
      %p218 = scmp.eq.s32.totalorder %s28, 1
      %p219 = scmp.ne.s32.totalorder %s214, %s216
      %p220 = scmp.eq.s32.totalorder %s28, 0
      %p221 = por %p219, %p220
      %p222 = scmp.ne.s32.totalorder %s214, %s216
      %p223 = scmp.eq.s32.totalorder %s33, 1
      %p224 = por %p222, %p223
      %p225 = scmp.ne.s32.totalorder %s216, %s217
      %p226 = scmp.eq.s32.totalorder %s33, 0
      %p227 = por %p225, %p226
      %p228 = scmp.ne.s32.totalorder %s216, %s217
      %p229 = scmp.eq.s32.totalorder %s34, 1
      %p230 = por %p228, %p229
      %p232 = scmp.ne.s32.totalorder %s217, %s231
      %p233 = scmp.eq.s32.totalorder %s34, 0
      %p234 = por %p232, %p233
      %s236 = sadd.s32 %s235, 1
      %p239 = scmp.eq.s32.totalorder %s28, 1
      %p240 = scmp.ne.s32.totalorder %s235, %s237
      %p241 = scmp.eq.s32.totalorder %s28, 0
      %p242 = por %p240, %p241
      %p243 = scmp.ne.s32.totalorder %s235, %s237
      %p244 = scmp.eq.s32.totalorder %s33, 1
      %p245 = por %p243, %p244
      %p246 = scmp.ne.s32.totalorder %s237, %s238
      %p247 = scmp.eq.s32.totalorder %s33, 0
      %p248 = por %p246, %p247
      %p249 = scmp.ne.s32.totalorder %s237, %s238
      %p250 = scmp.eq.s32.totalorder %s34, 1
      %p251 = por %p249, %p250
      %p253 = scmp.ne.s32.totalorder %s238, %s252
      %p254 = scmp.eq.s32.totalorder %s34, 0
      %p255 = por %p253, %p254
      %s257 = sadd.s32 %s256, 1
      %p260 = scmp.eq.s32.totalorder %s28, 1
      %p261 = scmp.ne.s32.totalorder %s256, %s258
      %p262 = scmp.eq.s32.totalorder %s28, 0
      %p263 = por %p261, %p262
      %p264 = scmp.ne.s32.totalorder %s256, %s258
      %p265 = scmp.eq.s32.totalorder %s33, 1
      %p266 = por %p264, %p265
      %p267 = scmp.ne.s32.totalorder %s258, %s259
      %p268 = scmp.eq.s32.totalorder %s33, 0
      %p269 = por %p267, %p268
      %p270 = scmp.ne.s32.totalorder %s258, %s259
      %p271 = scmp.eq.s32.totalorder %s34, 1
      %p272 = por %p270, %p271
      %p274 = scmp.ne.s32.totalorder %s259, %s273
      %p275 = scmp.eq.s32.totalorder %s34, 0
      %p276 = por %p274, %p275
      %s278 = sadd.s32 %s277, 1
      %p281 = scmp.eq.s32.totalorder %s28, 1
      %p282 = scmp.ne.s32.totalorder %s277, %s279
      %p283 = scmp.eq.s32.totalorder %s28, 0
      %p284 = por %p282, %p283
      %p285 = scmp.ne.s32.totalorder %s277, %s279
      %p286 = scmp.eq.s32.totalorder %s33, 1
      %p287 = por %p285, %p286
      %p288 = scmp.ne.s32.totalorder %s279, %s280
      %p289 = scmp.eq.s32.totalorder %s33, 0
      %p290 = por %p288, %p289
      %p291 = scmp.ne.s32.totalorder %s279, %s280
      %p292 = scmp.eq.s32.totalorder %s34, 1
      %p293 = por %p291, %p292
      %p295 = scmp.ne.s32.totalorder %s280, %s294
      %p296 = scmp.eq.s32.totalorder %s34, 0
      %p297 = por %p295, %p296
      %s299 = sadd.s32 %s298, 1
      %p302 = scmp.eq.s32.totalorder %s28, 1
      %p303 = scmp.ne.s32.totalorder %s298, %s300
      %p304 = scmp.eq.s32.totalorder %s28, 0
      %p305 = por %p303, %p304
      %p306 = scmp.ne.s32.totalorder %s298, %s300
      %p307 = scmp.eq.s32.totalorder %s33, 1
      %p308 = por %p306, %p307
      %p309 = scmp.ne.s32.totalorder %s300, %s301
      %p310 = scmp.eq.s32.totalorder %s33, 0
      %p311 = por %p309, %p310
      %p312 = scmp.ne.s32.totalorder %s300, %s301
      %p313 = scmp.eq.s32.totalorder %s34, 1
      %p314 = por %p312, %p313
      %p316 = scmp.ne.s32.totalorder %s301, %s315
      %p317 = scmp.eq.s32.totalorder %s34, 0
      %p318 = por %p316, %p317
      %s320 = sadd.s32 %s319, 1
      %p323 = scmp.eq.s32.totalorder %s28, 1
      %p324 = scmp.ne.s32.totalorder %s319, %s321
      %p325 = scmp.eq.s32.totalorder %s28, 0
      %p326 = por %p324, %p325
      %p327 = scmp.ne.s32.totalorder %s319, %s321
      %p328 = scmp.eq.s32.totalorder %s33, 1
      %p329 = por %p327, %p328
      %p330 = scmp.ne.s32.totalorder %s321, %s322
      %p331 = scmp.eq.s32.totalorder %s33, 0
      %p332 = por %p330, %p331
      %p333 = scmp.ne.s32.totalorder %s321, %s322
      %p334 = scmp.eq.s32.totalorder %s34, 1
      %p335 = por %p333, %p334
      %p337 = scmp.ne.s32.totalorder %s322, %s336
      %p338 = scmp.eq.s32.totalorder %s34, 0
      %p339 = por %p337, %p338
      %s340 = ssub.s32 %s28, %s35
      %p341 = scmp.eq.s32.totalorder %s340, 0
      %s343 = sadd.s32 %s342, 1
      %s344 = scalar_select %p341, %s342, %s343
      %p347 = pneg %p341
      %p348 = scmp.eq.s32.totalorder %s28, 1
      %p349 = por %p347, %p348
      %p350 = scmp.ne.s32.totalorder %s342, %s345
      %p351 = scmp.eq.s32.totalorder %s28, 0
      %p352 = por %p350, %p351
      %p353 = scmp.ne.s32.totalorder %s342, %s345
      %p354 = scmp.eq.s32.totalorder %s33, 1
      %p355 = por %p353, %p354
      %p356 = scmp.ne.s32.totalorder %s345, %s346
      %p357 = scmp.eq.s32.totalorder %s33, 0
      %p358 = por %p356, %p357
      %p359 = scmp.ne.s32.totalorder %s345, %s346
      %p360 = scmp.eq.s32.totalorder %s34, 1
      %p361 = por %p359, %p360
      %p363 = scmp.ne.s32.totalorder %s346, %s362
      %p364 = scmp.eq.s32.totalorder %s34, 0
      %p365 = por %p363, %p364
      %s366 = ssub.s32 %s28, %s35
      %p367 = scmp.eq.s32.totalorder %s366, 0
      %s369 = sadd.s32 %s368, 1
      %s370 = scalar_select %p367, %s368, %s369
      %p373 = pneg %p367
      %p374 = scmp.eq.s32.totalorder %s28, 1
      %p375 = por %p373, %p374
      %p376 = scmp.ne.s32.totalorder %s368, %s371
      %p377 = scmp.eq.s32.totalorder %s28, 0
      %p378 = por %p376, %p377
      %p379 = scmp.ne.s32.totalorder %s368, %s371
      %p380 = scmp.eq.s32.totalorder %s33, 1
      %p381 = por %p379, %p380
      %p382 = scmp.ne.s32.totalorder %s371, %s372
      %p383 = scmp.eq.s32.totalorder %s33, 0
      %p384 = por %p382, %p383
      %p385 = scmp.ne.s32.totalorder %s371, %s372
      %p386 = scmp.eq.s32.totalorder %s34, 1
      %p387 = por %p385, %p386
      %p389 = scmp.ne.s32.totalorder %s372, %s388
      %p390 = scmp.eq.s32.totalorder %s34, 0
      %p391 = por %p389, %p390
      %p392 = scmp.le.s32.totalorder 1, %s28
      %p393 = scmp.lt.s32.totalorder %s28, 3
      %p394 = pnand %p392, %p393
      %p395 = pneg %p394
      // Predicated region
      $region9: #{tpu_custom_call.1} parent=5 // pred_check
        _
      $region10: #{tpu_custom_call.1} parent=5 // pred_check_branch
        %397 = sbr.rel (%p394) target = $region12
      $region11: #{tpu_custom_call.1} parent=5 // pred_region
        %s398 = ssub.s32 %s28, 1
        // Predicated region
        $region13: #{tpu_custom_call.1} parent=11 // pred_check
          %p399 = pneg %p101
        $region14: #{tpu_custom_call.1} parent=11 // pred_check_branch
          %401 = sbr.rel (%p399) target = $region16
        $region15: #{tpu_custom_call.1} parent=11 // pred_region
          _
        $region16: #{tpu_custom_call.1} parent=11 // pred_fallthru
          _
        // Predicated region
        $region17: #{tpu_custom_call.1} parent=11 // pred_check
          %p402 = pneg %p122
        $region18: #{tpu_custom_call.1} parent=11 // pred_check_branch
          %404 = sbr.rel (%p402) target = $region20
        $region19: #{tpu_custom_call.1} parent=11 // pred_region
          _
        $region20: #{tpu_custom_call.1} parent=11 // pred_fallthru
          _
        // Predicated region
        $region21: #{tpu_custom_call.1} parent=11 // pred_check
          %p405 = pneg %p143
        $region22: #{tpu_custom_call.1} parent=11 // pred_check_branch
          %407 = sbr.rel (%p405) target = $region24
        $region23: #{tpu_custom_call.1} parent=11 // pred_region
          _
        $region24: #{tpu_custom_call.1} parent=11 // pred_fallthru
          _
        // Predicated region
        $region25: #{tpu_custom_call.1} parent=11 // pred_check
          %p408 = pneg %p164
        $region26: #{tpu_custom_call.1} parent=11 // pred_check_branch
          %410 = sbr.rel (%p408) target = $region28
        $region27: #{tpu_custom_call.1} parent=11 // pred_region
          _
        $region28: #{tpu_custom_call.1} parent=11 // pred_fallthru
          _
        // Predicated region
        $region29: #{tpu_custom_call.1} parent=11 // pred_check
          %p411 = pneg %p185
        $region30: #{tpu_custom_call.1} parent=11 // pred_check_branch
          %413 = sbr.rel (%p411) target = $region32
        $region31: #{tpu_custom_call.1} parent=11 // pred_region
          _
        $region32: #{tpu_custom_call.1} parent=11 // pred_fallthru
          _
        // Predicated region
        $region33: #{tpu_custom_call.1} parent=11 // pred_check
          %p414 = pneg %p206
        $region34: #{tpu_custom_call.1} parent=11 // pred_check_branch
          %416 = sbr.rel (%p414) target = $region36
        $region35: #{tpu_custom_call.1} parent=11 // pred_region
          _
        $region36: #{tpu_custom_call.1} parent=11 // pred_fallthru
          _
        // Predicated region
        $region37: #{tpu_custom_call.1} parent=11 // pred_check
          %p417 = pneg %p227
        $region38: #{tpu_custom_call.1} parent=11 // pred_check_branch
          %419 = sbr.rel (%p417) target = $region40
        $region39: #{tpu_custom_call.1} parent=11 // pred_region
          _
        $region40: #{tpu_custom_call.1} parent=11 // pred_fallthru
          _
        // Predicated region
        $region41: #{tpu_custom_call.1} parent=11 // pred_check
          %p420 = pneg %p248
        $region42: #{tpu_custom_call.1} parent=11 // pred_check_branch
          %422 = sbr.rel (%p420) target = $region44
        $region43: #{tpu_custom_call.1} parent=11 // pred_region
          _
        $region44: #{tpu_custom_call.1} parent=11 // pred_fallthru
          _
        // Predicated region
        $region45: #{tpu_custom_call.1} parent=11 // pred_check
          %p423 = pneg %p269
        $region46: #{tpu_custom_call.1} parent=11 // pred_check_branch
          %425 = sbr.rel (%p423) target = $region48
        $region47: #{tpu_custom_call.1} parent=11 // pred_region
          _
        $region48: #{tpu_custom_call.1} parent=11 // pred_fallthru
          _
        // Predicated region
        $region49: #{tpu_custom_call.1} parent=11 // pred_check
          %p426 = pneg %p290
        $region50: #{tpu_custom_call.1} parent=11 // pred_check_branch
          %428 = sbr.rel (%p426) target = $region52
        $region51: #{tpu_custom_call.1} parent=11 // pred_region
          _
        $region52: #{tpu_custom_call.1} parent=11 // pred_fallthru
          _
        // Predicated region
        $region53: #{tpu_custom_call.1} parent=11 // pred_check
          %p429 = pneg %p311
        $region54: #{tpu_custom_call.1} parent=11 // pred_check_branch
          %431 = sbr.rel (%p429) target = $region56
        $region55: #{tpu_custom_call.1} parent=11 // pred_region
          _
        $region56: #{tpu_custom_call.1} parent=11 // pred_fallthru
          _
        // Predicated region
        $region57: #{tpu_custom_call.1} parent=11 // pred_check
          %p432 = pneg %p332
        $region58: #{tpu_custom_call.1} parent=11 // pred_check_branch
          %434 = sbr.rel (%p432) target = $region60
        $region59: #{tpu_custom_call.1} parent=11 // pred_region
          _
        $region60: #{tpu_custom_call.1} parent=11 // pred_fallthru
          _
      $region12: #{tpu_custom_call.1} parent=5 // pred_fallthru
        _
      %p435 = scmp.lt.s32.totalorder %s28, 2
      // Predicated region
      $region61: #{tpu_custom_call.1} parent=5 // pred_check
        %p436 = pneg %p435
      $region62: #{tpu_custom_call.1} parent=5 // pred_check_branch
        %438 = sbr.rel (%p436) target = $region64
      $region63: #{tpu_custom_call.1} parent=5 // pred_region
        // Predicated region
        $region65: #{tpu_custom_call.1} parent=63 // pred_check
          %p439 = pneg %p48
        $region66: #{tpu_custom_call.1} parent=63 // pred_check_branch
          %441 = sbr.rel (%p439) target = $region68
        $region67: #{tpu_custom_call.1} parent=63 // pred_region
          %p442 = scmp.lt.s32.totalorder %s28, 1
          %s443 = scalar_select %p442, %s28, 1
          %s444 = smul.addr %s443, 3
          %s445 = smul.addr %s444, 8
          %s446 = scalar_lea.vmem %s0, %s445
        $region68: #{tpu_custom_call.1} parent=63 // pred_fallthru
          _
        // Predicated region
        $region69: #{tpu_custom_call.1} parent=63 // pred_check
          %p447 = pneg %p74
        $region70: #{tpu_custom_call.1} parent=63 // pred_check_branch
          %449 = sbr.rel (%p447) target = $region72
        $region71: #{tpu_custom_call.1} parent=63 // pred_region
          %p450 = scmp.lt.s32.totalorder %s28, 1
          %s451 = scalar_select %p450, %s28, 1
          %s452 = smul.addr %s451, 2
          %s453 = smul.addr %s452, 8
          %s454 = scalar_lea.vmem %s1, %s453
        $region72: #{tpu_custom_call.1} parent=63 // pred_fallthru
          _
      $region64: #{tpu_custom_call.1} parent=5 // pred_fallthru
        _
      %p455 = scmp.le.s32.totalorder 1, %s28
      %p456 = scmp.lt.s32.totalorder %s28, 3
      %p457 = pnand %p455, %p456
      %p458 = pneg %p457
      // Predicated region
      $region73: #{tpu_custom_call.1} parent=5 // pred_check
        _
      $region74: #{tpu_custom_call.1} parent=5 // pred_check_branch
        %460 = sbr.rel (%p457) target = $region76
      $region75: #{tpu_custom_call.1} parent=5 // pred_region
        %s461 = ssub.s32 %s28, 1
        %p462 = scmp.lt.s32.totalorder %s33, 1
        %s463 = scalar_select %p462, %s33, 1
        %s464 = smul.addr %s463, 3
        %s465 = smul.addr %s464, 8
        %s466 = scalar_lea.vmem %s0, %s465
        %p467 = pneg %p54
        %p468 = pneg %p51
        %p469 = scmp.lt.s32.totalorder %s33, 1
        %s470 = scalar_select %p469, %s33, 1
        %s471 = smul.addr %s470, 2
        %s472 = smul.addr %s471, 8
        %s473 = scalar_lea.vmem %s1, %s472
        %p474 = pneg %p80
        %p475 = pneg %p77
        %p476 = pneg %p101
        %p477 = pneg %p98
        %p478 = pneg %p122
        %p479 = pneg %p119
        %p480 = pneg %p143
        %p481 = pneg %p140
        %p482 = pneg %p164
        %p483 = pneg %p161
        %p484 = pneg %p185
        %p485 = pneg %p182
        %p486 = pneg %p206
        %p487 = pneg %p203
        %p488 = pneg %p227
        %p489 = pneg %p224
        %p490 = pneg %p248
        %p491 = pneg %p245
        %p492 = pneg %p269
        %p493 = pneg %p266
        %p494 = pneg %p290
        %p495 = pneg %p287
        %p496 = pneg %p311
        %p497 = pneg %p308
        %p498 = pneg %p332
        %p499 = pneg %p329
        %p500 = pneg %p358
        %p501 = pneg %p355
        %s502 = sand.u32 %s345, 1
        %s503 = scalar_lea.sflag [#allocation3], %s502
        %s504 = sand.u32 %s345, 1
        %s505 = smul.addr %s504, 8
        %s506 = scalar_lea.vmem [#allocation2], %s505
        %p507 = pneg %p384
        %p508 = pneg %p381
        %s509 = sand.u32 %s371, 1
        %s510 = scalar_lea.sflag [#allocation5], %s509
        %s511 = sand.u32 %s371, 1
        %s512 = smul.addr %s511, 16
        %s513 = scalar_lea.vmem [#allocation4], %s512
        %p514 = scmp.lt.s32.totalorder %s33, 1
        %s515 = scalar_select %p514, %s33, 1
        %s516 = smul.addr %s515, 3
        %s517 = smul.addr %s516, 8
        %s518 = scalar_lea.vmem %s0, %s517
        %p519 = scmp.lt.s32.totalorder %s33, 1
        %s520 = scalar_select %p519, %s33, 1
        %s521 = smul.addr %s520, 2
        %s522 = smul.addr %s521, 8
        %s523 = scalar_lea.vmem %s1, %s522
        %v524 = vld [vmem:[%s3] sm:$0x1]
        %v526 = vperm.slane %v524, 0
        %v528 = vld [vmem:[%s518] sm:$0xff]
        %v529 = vld [vmem:[%s518 + $0x8] sm:$0xff]
        %v530 = vld [vmem:[%s2] sm:$0xff]
        %vm531 = vcmask 64512
        %v533 = vsel %vm531, %v528, 0
        %v536 = vsel %vm531, %v529, 0
        %538 = vmatpush.msra.mxu0 0.0
        %539 = vmatpush.msra.mxu0 0.0
        %540 = vmatpush.msra.mxu0 0.0
        %541 = vmatpush.msra.mxu0 0.0
        %542 = vmatpush.msra.mxu0 0.0
        %543 = vmatpush.msra.mxu0 0.0
        %544 = vmatpush.msra.mxu0 0.0
        %545 = vmatpush.msra.mxu0 0.0
        %546 = vmatpush.msra.mxu0 0.0
        %547 = vmatpush.msra.mxu0 0.0
        %548 = vmatpush.msra.mxu0 0.0
        %549 = vmatpush.msra.mxu0 0.0
        %550 = vmatpush.msra.mxu0 0.0
        %551 = vmatpush.msra.mxu0 0.0
        %552 = vmatpush.msra.mxu0 0.0
        %553 = vmatpush.msra.mxu0 %v530
        %554 = vmatmul.f32.gmra.mxu0 %v533
        %v555 = vpop.f32.mrf.mxu0
        %v556 = vadd.f32 0.0, %v555
        %557 = vmatmul.f32.gmra.mxu0 %v536
        %v558 = vpop.f32.mrf.mxu0
        %v559 = vadd.f32 0.0, %v558
        %560 = vdwg.mxu0
        %v561 = vadd.f32 %v526, %v556
        %v562 = vadd.f32 %v526, %v559
        %v563 = vld [vmem:[%s518 + $0x1] sm:$0xff]
        %v564 = vld [vmem:[%s518 + $0x9] sm:$0xff]
        %s565 = scalar_lea.vmem %s2, 8
        %v566 = vld [vmem:[%s565] sm:$0xff]
        %v568 = vsel %vm531, %v563, 0
        %v571 = vsel %vm531, %v564, 0
        %573 = vmatpush.msra.mxu0 0.0
        %574 = vmatpush.msra.mxu0 0.0
        %575 = vmatpush.msra.mxu0 0.0
        %576 = vmatpush.msra.mxu0 0.0
        %577 = vmatpush.msra.mxu0 0.0
        %578 = vmatpush.msra.mxu0 0.0
        %579 = vmatpush.msra.mxu0 0.0
        %580 = vmatpush.msra.mxu0 0.0
        %581 = vmatpush.msra.mxu0 0.0
        %582 = vmatpush.msra.mxu0 0.0
        %583 = vmatpush.msra.mxu0 0.0
        %584 = vmatpush.msra.mxu0 0.0
        %585 = vmatpush.msra.mxu0 0.0
        %586 = vmatpush.msra.mxu0 0.0
        %587 = vmatpush.msra.mxu0 0.0
        %588 = vmatpush.msra.mxu0 %v566
        %589 = vmatmul.f32.gmra.mxu0 %v568
        %v590 = vpop.f32.mrf.mxu0
        %v591 = vadd.f32 0.0, %v590
        %592 = vmatmul.f32.gmra.mxu0 %v571
        %v593 = vpop.f32.mrf.mxu0
        %v594 = vadd.f32 0.0, %v593
        %595 = vdwg.mxu0
        %v596 = vadd.f32 %v561, %v591
        %v597 = vadd.f32 %v562, %v594
        %v598 = vld [vmem:[%s518 + $0x2] sm:$0xff]
        %v599 = vld [vmem:[%s518 + $0xa] sm:$0xff]
        %s600 = scalar_lea.vmem %s2, 16
        %v601 = vld [vmem:[%s600] sm:$0xff]
        %v603 = vsel %vm531, %v598, 0
        %v606 = vsel %vm531, %v599, 0
        %608 = vmatpush.msra.mxu0 0.0
        %609 = vmatpush.msra.mxu0 0.0
        %610 = vmatpush.msra.mxu0 0.0
        %611 = vmatpush.msra.mxu0 0.0
        %612 = vmatpush.msra.mxu0 0.0
        %613 = vmatpush.msra.mxu0 0.0
        %614 = vmatpush.msra.mxu0 0.0
        %615 = vmatpush.msra.mxu0 0.0
        %616 = vmatpush.msra.mxu0 0.0
        %617 = vmatpush.msra.mxu0 0.0
        %618 = vmatpush.msra.mxu0 0.0
        %619 = vmatpush.msra.mxu0 0.0
        %620 = vmatpush.msra.mxu0 0.0
        %621 = vmatpush.msra.mxu0 0.0
        %622 = vmatpush.msra.mxu0 0.0
        %623 = vmatpush.msra.mxu0 %v601
        %624 = vmatmul.f32.gmra.mxu0 %v603
        %v625 = vpop.f32.mrf.mxu0
        %v626 = vadd.f32 0.0, %v625
        %627 = vmatmul.f32.gmra.mxu0 %v606
        %v628 = vpop.f32.mrf.mxu0
        %v629 = vadd.f32 0.0, %v628
        %630 = vdwg.mxu0
        %v631 = vadd.f32 %v596, %v626
        %v632 = vadd.f32 %v597, %v629
        %v633 = vld [vmem:[%s518 + $0x3] sm:$0xff]
        %v634 = vld [vmem:[%s518 + $0xb] sm:$0xff]
        %s635 = scalar_lea.vmem %s2, 24
        %v636 = vld [vmem:[%s635] sm:$0xff]
        %v638 = vsel %vm531, %v633, 0
        %v641 = vsel %vm531, %v634, 0
        %643 = vmatpush.msra.mxu0 0.0
        %644 = vmatpush.msra.mxu0 0.0
        %645 = vmatpush.msra.mxu0 0.0
        %646 = vmatpush.msra.mxu0 0.0
        %647 = vmatpush.msra.mxu0 0.0
        %648 = vmatpush.msra.mxu0 0.0
        %649 = vmatpush.msra.mxu0 0.0
        %650 = vmatpush.msra.mxu0 0.0
        %651 = vmatpush.msra.mxu0 0.0
        %652 = vmatpush.msra.mxu0 0.0
        %653 = vmatpush.msra.mxu0 0.0
        %654 = vmatpush.msra.mxu0 0.0
        %655 = vmatpush.msra.mxu0 0.0
        %656 = vmatpush.msra.mxu0 0.0
        %657 = vmatpush.msra.mxu0 0.0
        %658 = vmatpush.msra.mxu0 %v636
        %659 = vmatmul.f32.gmra.mxu0 %v638
        %v660 = vpop.f32.mrf.mxu0
        %v661 = vadd.f32 0.0, %v660
        %662 = vmatmul.f32.gmra.mxu0 %v641
        %v663 = vpop.f32.mrf.mxu0
        %v664 = vadd.f32 0.0, %v663
        %665 = vdwg.mxu0
        %v666 = vadd.f32 %v631, %v661
        %v667 = vadd.f32 %v632, %v664
        %v668 = vld [vmem:[%s518 + $0x4] sm:$0xff]
        %v669 = vld [vmem:[%s518 + $0xc] sm:$0xff]
        %s670 = scalar_lea.vmem %s2, 32
        %v671 = vld [vmem:[%s670] sm:$0xff]
        %v673 = vsel %vm531, %v668, 0
        %v676 = vsel %vm531, %v669, 0
        %678 = vmatpush.msra.mxu0 0.0
        %679 = vmatpush.msra.mxu0 0.0
        %680 = vmatpush.msra.mxu0 0.0
        %681 = vmatpush.msra.mxu0 0.0
        %682 = vmatpush.msra.mxu0 0.0
        %683 = vmatpush.msra.mxu0 0.0
        %684 = vmatpush.msra.mxu0 0.0
        %685 = vmatpush.msra.mxu0 0.0
        %686 = vmatpush.msra.mxu0 0.0
        %687 = vmatpush.msra.mxu0 0.0
        %688 = vmatpush.msra.mxu0 0.0
        %689 = vmatpush.msra.mxu0 0.0
        %690 = vmatpush.msra.mxu0 0.0
        %691 = vmatpush.msra.mxu0 0.0
        %692 = vmatpush.msra.mxu0 0.0
        %693 = vmatpush.msra.mxu0 %v671
        %694 = vmatmul.f32.gmra.mxu0 %v673
        %v695 = vpop.f32.mrf.mxu0
        %v696 = vadd.f32 0.0, %v695
        %697 = vmatmul.f32.gmra.mxu0 %v676
        %v698 = vpop.f32.mrf.mxu0
        %v699 = vadd.f32 0.0, %v698
        %700 = vdwg.mxu0
        %v701 = vadd.f32 %v666, %v696
        %v702 = vadd.f32 %v667, %v699
        %v703 = vld [vmem:[%s518 + $0x5] sm:$0xff]
        %v704 = vld [vmem:[%s518 + $0xd] sm:$0xff]
        %s705 = scalar_lea.vmem %s2, 40
        %v706 = vld [vmem:[%s705] sm:$0xff]
        %v708 = vsel %vm531, %v703, 0
        %v711 = vsel %vm531, %v704, 0
        %713 = vmatpush.msra.mxu0 0.0
        %714 = vmatpush.msra.mxu0 0.0
        %715 = vmatpush.msra.mxu0 0.0
        %716 = vmatpush.msra.mxu0 0.0
        %717 = vmatpush.msra.mxu0 0.0
        %718 = vmatpush.msra.mxu0 0.0
        %719 = vmatpush.msra.mxu0 0.0
        %720 = vmatpush.msra.mxu0 0.0
        %721 = vmatpush.msra.mxu0 0.0
        %722 = vmatpush.msra.mxu0 0.0
        %723 = vmatpush.msra.mxu0 0.0
        %724 = vmatpush.msra.mxu0 0.0
        %725 = vmatpush.msra.mxu0 0.0
        %726 = vmatpush.msra.mxu0 0.0
        %727 = vmatpush.msra.mxu0 0.0
        %728 = vmatpush.msra.mxu0 %v706
        %729 = vmatmul.f32.gmra.mxu0 %v708
        %v730 = vpop.f32.mrf.mxu0
        %v731 = vadd.f32 0.0, %v730
        %732 = vmatmul.f32.gmra.mxu0 %v711
        %v733 = vpop.f32.mrf.mxu0
        %v734 = vadd.f32 0.0, %v733
        %735 = vdwg.mxu0
        %v736 = vadd.f32 %v701, %v731
        %v737 = vadd.f32 %v702, %v734
        %v738 = vld [vmem:[%s518 + $0x6] sm:$0xff]
        %v739 = vld [vmem:[%s518 + $0xe] sm:$0xff]
        %s740 = scalar_lea.vmem %s2, 48
        %v741 = vld [vmem:[%s740] sm:$0xff]
        %v743 = vsel %vm531, %v738, 0
        %v746 = vsel %vm531, %v739, 0
        %748 = vmatpush.msra.mxu0 0.0
        %749 = vmatpush.msra.mxu0 0.0
        %750 = vmatpush.msra.mxu0 0.0
        %751 = vmatpush.msra.mxu0 0.0
        %752 = vmatpush.msra.mxu0 0.0
        %753 = vmatpush.msra.mxu0 0.0
        %754 = vmatpush.msra.mxu0 0.0
        %755 = vmatpush.msra.mxu0 0.0
        %756 = vmatpush.msra.mxu0 0.0
        %757 = vmatpush.msra.mxu0 0.0
        %758 = vmatpush.msra.mxu0 0.0
        %759 = vmatpush.msra.mxu0 0.0
        %760 = vmatpush.msra.mxu0 0.0
        %761 = vmatpush.msra.mxu0 0.0
        %762 = vmatpush.msra.mxu0 0.0
        %763 = vmatpush.msra.mxu0 %v741
        %764 = vmatmul.f32.gmra.mxu0 %v743
        %v765 = vpop.f32.mrf.mxu0
        %v766 = vadd.f32 0.0, %v765
        %767 = vmatmul.f32.gmra.mxu0 %v746
        %v768 = vpop.f32.mrf.mxu0
        %v769 = vadd.f32 0.0, %v768
        %770 = vdwg.mxu0
        %v771 = vadd.f32 %v736, %v766
        %v772 = vadd.f32 %v737, %v769
        %v773 = vld [vmem:[%s518 + $0x7] sm:$0xff]
        %v774 = vld [vmem:[%s518 + $0xf] sm:$0xff]
        %s775 = scalar_lea.vmem %s2, 56
        %v776 = vld [vmem:[%s775] sm:$0xff]
        %v778 = vsel %vm531, %v773, 0
        %v781 = vsel %vm531, %v774, 0
        %783 = vmatpush.msra.mxu0 0.0
        %784 = vmatpush.msra.mxu0 0.0
        %785 = vmatpush.msra.mxu0 0.0
        %786 = vmatpush.msra.mxu0 0.0
        %787 = vmatpush.msra.mxu0 0.0
        %788 = vmatpush.msra.mxu0 0.0
        %789 = vmatpush.msra.mxu0 0.0
        %790 = vmatpush.msra.mxu0 0.0
        %791 = vmatpush.msra.mxu0 0.0
        %792 = vmatpush.msra.mxu0 0.0
        %793 = vmatpush.msra.mxu0 0.0
        %794 = vmatpush.msra.mxu0 0.0
        %795 = vmatpush.msra.mxu0 0.0
        %796 = vmatpush.msra.mxu0 0.0
        %797 = vmatpush.msra.mxu0 0.0
        %798 = vmatpush.msra.mxu0 %v776
        %799 = vmatmul.f32.gmra.mxu0 %v778
        %v800 = vpop.f32.mrf.mxu0
        %v801 = vadd.f32 0.0, %v800
        %802 = vmatmul.f32.gmra.mxu0 %v781
        %v803 = vpop.f32.mrf.mxu0
        %v804 = vadd.f32 0.0, %v803
        %805 = vdwg.mxu0
        %v806 = vadd.f32 %v771, %v801
        %v807 = vadd.f32 %v772, %v804
        %v808 = vld [vmem:[%s4] sm:$0xff]
        %v809 = vld [vmem:[%s5] sm:$0x1]
        %v811 = vperm.slane %v809, 0
        %v814 = vsel %vm531, %v806, 0
        %v817 = vsel %vm531, %v807, 0
        %819 = vmatpush.msra.mxu0 0.0
        %820 = vmatpush.msra.mxu0 0.0
        %821 = vmatpush.msra.mxu0 0.0
        %822 = vmatpush.msra.mxu0 0.0
        %823 = vmatpush.msra.mxu0 0.0
        %824 = vmatpush.msra.mxu0 0.0
        %825 = vmatpush.msra.mxu0 0.0
        %826 = vmatpush.msra.mxu0 0.0
        %827 = vmatpush.msra.mxu0 0.0
        %828 = vmatpush.msra.mxu0 0.0
        %829 = vmatpush.msra.mxu0 0.0
        %830 = vmatpush.msra.mxu0 0.0
        %831 = vmatpush.msra.mxu0 0.0
        %832 = vmatpush.msra.mxu0 0.0
        %833 = vmatpush.msra.mxu0 0.0
        %834 = vmatpush.msra.mxu0 %v808
        %835 = vmatmul.f32.gmra.mxu0 %v814
        %v836 = vpop.f32.mrf.mxu0
        %v837 = vadd.f32 %v811, %v836
        %838 = vmatmul.f32.gmra.mxu0 %v817
        %v839 = vpop.f32.mrf.mxu0
        %v840 = vadd.f32 %v811, %v839
        %841 = vdwg.mxu0
        %v842 = vld [vmem:[%s6] sm:$0xff]
        %v843 = vld [vmem:[%s7] sm:$0x1]
        %v845 = vperm.slane %v843, 0
        %847 = vmatpush.msra.mxu0 0.0
        %848 = vmatpush.msra.mxu0 0.0
        %849 = vmatpush.msra.mxu0 0.0
        %850 = vmatpush.msra.mxu0 0.0
        %851 = vmatpush.msra.mxu0 0.0
        %852 = vmatpush.msra.mxu0 0.0
        %853 = vmatpush.msra.mxu0 0.0
        %854 = vmatpush.msra.mxu0 0.0
        %855 = vmatpush.msra.mxu0 0.0
        %856 = vmatpush.msra.mxu0 0.0
        %857 = vmatpush.msra.mxu0 0.0
        %858 = vmatpush.msra.mxu0 0.0
        %859 = vmatpush.msra.mxu0 0.0
        %860 = vmatpush.msra.mxu0 0.0
        %861 = vmatpush.msra.mxu0 0.0
        %862 = vmatpush.msra.mxu0 %v842
        %863 = vmatmul.f32.gmra.mxu0 %v814
        %v864 = vpop.f32.mrf.mxu0
        %v865 = vadd.f32 %v845, %v864
        %866 = vmatmul.f32.gmra.mxu0 %v817
        %v867 = vpop.f32.mrf.mxu0
        %v868 = vadd.f32 %v845, %v867
        %869 = vdwg.mxu0
        %v870 = vmax.f32 %v865, 0.0
        %v871 = vmax.f32 %v868, 0.0
        %v872 = vand.u32 2147483647, %v865
        %v873 = vand.u32 2147483647, %v868
        %v874 = vsub.f32 0.0, %v872
        %v875 = vsub.f32 0.0, %v873
        %v876 = vmul.f32 %v874, 1.442695
        %v877 = vpow.pop %v876
        %v878 = vmul.f32 %v875, 1.442695
        %v879 = vpow.pop %v878
        %v880 = vadd.f32 %v877, 1.0
        %v881 = vlog2.pop %v880
        %v882 = vmul.f32 %v881, 0.6931472
        %v883 = vmul.f32 -0.5, %v877
        %v884 = vadd.f32 %v883, 1.0
        %v885 = vmul.f32 %v884, %v877
        %v886 = vand.u32 2147483647, %v877
        %vm887 = vcmp.lt.f32.partialorder %v886, 0.0004427343
        %v888 = vsel %vm887, %v885, %v882
        %v889 = vadd.f32 %v879, 1.0
        %v890 = vlog2.pop %v889
        %v891 = vmul.f32 %v890, 0.6931472
        %v892 = vmul.f32 -0.5, %v879
        %v893 = vadd.f32 %v892, 1.0
        %v894 = vmul.f32 %v893, %v879
        %v895 = vand.u32 2147483647, %v879
        %vm896 = vcmp.lt.f32.partialorder %v895, 0.0004427343
        %v897 = vsel %vm896, %v894, %v891
        %v898 = vadd.f32 %v870, %v888
        %v899 = vadd.f32 %v871, %v897
        %v900 = vld [vmem:[%s523] sm:$0xff]
        %v901 = vld [vmem:[%s523 + $0x8] sm:$0xff]
        %v902 = vmul.f32 %v898, %v900
        %v903 = vmul.f32 %v899, %v901
        %v904 = vadd.f32 %v837, %v902
        %v905 = vadd.f32 %v840, %v903
        %v906 = vld [vmem:[%s8] sm:$0xff]
        %v907 = vld [vmem:[%s9] sm:$0x1]
        %v909 = vperm.slane %v907, 0
        %v912 = vsel %vm531, %v904, 0
        %v915 = vsel %vm531, %v905, 0
        %917 = vmatpush.msra.mxu0 0.0
        %918 = vmatpush.msra.mxu0 0.0
        %919 = vmatpush.msra.mxu0 0.0
        %920 = vmatpush.msra.mxu0 0.0
        %921 = vmatpush.msra.mxu0 0.0
        %922 = vmatpush.msra.mxu0 0.0
        %923 = vmatpush.msra.mxu0 0.0
        %924 = vmatpush.msra.mxu0 0.0
        %925 = vmatpush.msra.mxu0 0.0
        %926 = vmatpush.msra.mxu0 0.0
        %927 = vmatpush.msra.mxu0 0.0
        %928 = vmatpush.msra.mxu0 0.0
        %929 = vmatpush.msra.mxu0 0.0
        %930 = vmatpush.msra.mxu0 0.0
        %931 = vmatpush.msra.mxu0 0.0
        %932 = vmatpush.msra.mxu0 %v906
        %933 = vmatmul.f32.gmra.mxu0 %v912
        %v934 = vpop.f32.mrf.mxu0
        %v935 = vadd.f32 %v909, %v934
        %936 = vmatmul.f32.gmra.mxu0 %v915
        %v937 = vpop.f32.mrf.mxu0
        %v938 = vadd.f32 %v909, %v937
        %939 = vdwg.mxu0
        %v940 = vld [vmem:[%s10] sm:$0xff]
        %v941 = vld [vmem:[%s11] sm:$0xff]
        %943 = vset.pattern.permute.xlu0 0
        %944 = vperm.xlu0 %943, %v941
        %v945 = vpop.permute.xlu0 %944
        %vm947 = vcmask 130048
        %v949 = vsel %vm947, %v940, 0
        %951 = vmatpush.msra.mxu0 0.0
        %952 = vmatpush.msra.mxu0 0.0
        %953 = vmatpush.msra.mxu0 0.0
        %954 = vmatpush.msra.mxu0 0.0
        %955 = vmatpush.msra.mxu0 0.0
        %956 = vmatpush.msra.mxu0 0.0
        %957 = vmatpush.msra.mxu0 0.0
        %958 = vmatpush.msra.mxu0 0.0
        %959 = vmatpush.msra.mxu0 0.0
        %960 = vmatpush.msra.mxu0 0.0
        %961 = vmatpush.msra.mxu0 0.0
        %962 = vmatpush.msra.mxu0 0.0
        %963 = vmatpush.msra.mxu0 0.0
        %964 = vmatpush.msra.mxu0 0.0
        %965 = vmatpush.msra.mxu0 %v905
        %966 = vmatpush.msra.mxu0 %v904
        %967 = vmatmul.f32.gmra.mxu0 %v949
        %v968 = vpop.f32.mrf.mxu0
        %v969 = vadd.f32 %v945, %v968
        %970 = vdwg.mxu0
        %v971 = vld [vmem:[%s12] sm:$0xff]
        %v972 = vld [vmem:[%s13] sm:$0x1]
        %v974 = vperm.slane %v972, 0
        %v977 = vsel %vm531, %v969, 0
        %979 = vmatpush.msra.mxu0 0.0
        %980 = vmatpush.msra.mxu0 0.0
        %981 = vmatpush.msra.mxu0 0.0
        %982 = vmatpush.msra.mxu0 0.0
        %983 = vmatpush.msra.mxu0 0.0
        %984 = vmatpush.msra.mxu0 0.0
        %985 = vmatpush.msra.mxu0 0.0
        %986 = vmatpush.msra.mxu0 0.0
        %987 = vmatpush.msra.mxu0 0.0
        %988 = vmatpush.msra.mxu0 0.0
        %989 = vmatpush.msra.mxu0 0.0
        %990 = vmatpush.msra.mxu0 0.0
        %991 = vmatpush.msra.mxu0 0.0
        %992 = vmatpush.msra.mxu0 0.0
        %993 = vmatpush.msra.mxu0 0.0
        %994 = vmatpush.msra.mxu0 %v971
        %995 = vmatmul.f32.gmra.mxu0 %v977
        %v996 = vpop.f32.mrf.mxu0
        %v997 = vadd.f32 %v974, %v996
        %998 = vdwg.mxu0
        %999 = vst.msk [vmem:[%s506] sm:$0xff] %vm531, %v997
        %1000 = vrot.lane.b32.xlu0 %v904, 8
        %v1001 = vpop.permute.xlu0 %1000
        %1002 = vrot.lane.b32.xlu0 %v905, 8
        %v1003 = vpop.permute.xlu0 %1002
        %1008 = vrot.lane.b32.xlu0 %v837, 16
        %v1009 = vpop.permute.xlu0 %1008
        %1010 = vrot.lane.b32.xlu0 %v840, 16
        %v1011 = vpop.permute.xlu0 %1010
        %1016 = vrot.lane.b32.xlu0 %v898, 24
        %v1017 = vpop.permute.xlu0 %1016
        %1018 = vrot.lane.b32.xlu0 %v899, 24
        %v1019 = vpop.permute.xlu0 %1018
        %v1022 = vsel %vm531, %v935, %v1001
        %v1023 = vsel %vm531, %v938, %v1003
        %v1024 = vsel %vm947, %v1022, %v1009
        %v1025 = vsel %vm947, %v1023, %v1011
        %vm1026 = vcmask 195584
        %v1027 = vsel %vm1026, %v1024, %v1017
        %v1028 = vsel %vm1026, %v1025, %v1019
        %vm1029 = vcmask 261120
        %1030 = vst.msk [vmem:[%s513] sm:$0xff] %vm1029, %v1027
        %1031 = vst.msk [vmem:[%s513 + $0x8] sm:$0xff] %vm1029, %v1028
        %s1032 = sand.u32 %s345, 1
        %s1033 = scalar_lea.sflag [#allocation3], %s1032
        %s1034 = sand.u32 %s345, 1
        %s1035 = smul.addr %s1034, 8
        %s1036 = scalar_lea.vmem [#allocation2], %s1035
        %s1037 = sand.u32 %s371, 1
        %s1038 = scalar_lea.sflag [#allocation5], %s1037
        %s1039 = sand.u32 %s371, 1
        %s1040 = smul.addr %s1039, 16
        %s1041 = scalar_lea.vmem [#allocation4], %s1040
        // Predicated region
        $region77: #{tpu_custom_call.1} parent=75 // pred_check
          %p1042 = pneg %p355
        $region78: #{tpu_custom_call.1} parent=75 // pred_check_branch
          %1044 = sbr.rel (%p1042) target = $region80
        $region79: #{tpu_custom_call.1} parent=75 // pred_region
          %1046 = vsyncadd %s1033, 0
          %s1047 = smul.addr %s33, 8
          %s1048 = scalar_lea.hbm %s14, %s1047
          %s1050 = sshll.u32 %s1036, 4
          %s1051 = int_to_ptr.vmem [resolvable:$true] %s1050
          %s1052 = sshll.u32 %s1048, 4
          %s1053 = int_to_ptr.hbm [resolvable:$true] %s1052
          %1055 = dma.vmem_to_hbm [thread:$0]  %s1051, 128, %s1053, %s1033
        $region80: #{tpu_custom_call.1} parent=75 // pred_fallthru
          _
        // Predicated region
        $region81: #{tpu_custom_call.1} parent=75 // pred_check
          %p1056 = pneg %p381
        $region82: #{tpu_custom_call.1} parent=75 // pred_check_branch
          %1058 = sbr.rel (%p1056) target = $region84
        $region83: #{tpu_custom_call.1} parent=75 // pred_region
          %1060 = vsyncadd %s1038, 0
          %s1061 = smul.addr %s33, 2
          %s1062 = smul.addr %s1061, 8
          %s1063 = scalar_lea.hbm %s15, %s1062
          %s1064 = sshll.u32 %s1041, 4
          %s1065 = int_to_ptr.vmem [resolvable:$true] %s1064
          %s1066 = sshll.u32 %s1063, 4
          %s1067 = int_to_ptr.hbm [resolvable:$true] %s1066
          %1072 = dma.vmem_to_hbm [thread:$0]  %s1065, 256, %s1067, %s1038, 128, 128, 8
        $region84: #{tpu_custom_call.1} parent=75 // pred_fallthru
          _
      $region76: #{tpu_custom_call.1} parent=5 // pred_fallthru
        _
      %p1073 = scmp.le.s32.totalorder 2, %s28
      // Predicated region
      $region85: #{tpu_custom_call.1} parent=5 // pred_check
        %p1074 = pneg %p1073
      $region86: #{tpu_custom_call.1} parent=5 // pred_check_branch
        %1076 = sbr.rel (%p1074) target = $region88
      $region87: #{tpu_custom_call.1} parent=5 // pred_region
        %s1077 = ssub.s32 %s28, 2
        // Predicated region
        $region89: #{tpu_custom_call.1} parent=87 // pred_check
          %p1078 = pneg %p361
        $region90: #{tpu_custom_call.1} parent=87 // pred_check_branch
          %1080 = sbr.rel (%p1078) target = $region92
        $region91: #{tpu_custom_call.1} parent=87 // pred_region
          %s1081 = sand.u32 %s346, 1
          %s1082 = scalar_lea.sflag [#allocation3], %s1081
          %s1083 = sand.u32 %s346, 1
          %s1084 = smul.addr %s1083, 8
          %s1085 = scalar_lea.vmem [#allocation2], %s1084
          %1087 = dma.done %s1082, 128
        $region92: #{tpu_custom_call.1} parent=87 // pred_fallthru
          _
        // Predicated region
        $region93: #{tpu_custom_call.1} parent=87 // pred_check
          %p1088 = pneg %p387
        $region94: #{tpu_custom_call.1} parent=87 // pred_check_branch
          %1090 = sbr.rel (%p1088) target = $region96
        $region95: #{tpu_custom_call.1} parent=87 // pred_region
          %s1091 = sand.u32 %s372, 1
          %s1092 = scalar_lea.sflag [#allocation5], %s1091
          %s1093 = sand.u32 %s372, 1
          %s1094 = smul.addr %s1093, 16
          %s1095 = scalar_lea.vmem [#allocation4], %s1094
          %1097 = dma.done %s1092, 256
        $region96: #{tpu_custom_call.1} parent=87 // pred_fallthru
          _
      $region88: #{tpu_custom_call.1} parent=5 // pred_fallthru
        _
    $region6: #{tpu_custom_call.1} parent=1 // loop_footer
      %s32 = sadd.s32 1, %s28
    $region7: #{tpu_custom_call.1} parent=1 // loop_footer_branch
      %27 = sbr.rel target = $region3
    $region8: #{tpu_custom_call.1} parent=1 // loop_exit
      _
    %1098 = vsyncpa [#allocation3], 1
    %s1099 = scalar_lea.sflag [#allocation3], 1
    %1100 = vsyncpa %s1099, 1
    %1101 = vsyncpa [#allocation5], 1
    %s1102 = scalar_lea.sflag [#allocation5], 1
    %1103 = vsyncpa %s1102, 1

</llo_original>
